<compile_context>
chip_gen: v6e
topology: v6e:2x2x1
jax: 0.10.0
libtpu: 0.0.40
codegen_flags: <defaults>
</compile_context>

<pallas_src>
import functools
import math

import jax
import jax.numpy as jnp
from jax.experimental import pallas as pl
from jax.experimental.pallas import tpu as pltpu


# ----------------------------- in-kernel helpers -----------------------------

def _erf(x):
    # Abramowitz & Stegun 7.1.26 rational approximation (|err| < 1.5e-7).
    # The divide goes to the EUP via pl.reciprocal (separate VLIW slot).
    a1, a2, a3, a4, a5 = 0.254829592, -0.284496736, 1.421413741, -1.453152027, 1.061405429
    p = 0.3275911
    s = jnp.where(x >= 0.0, 1.0, -1.0)
    ax = jnp.abs(x)
    t = pl.reciprocal(1.0 + p * ax, approx=True)
    poly = ((((a5 * t + a4) * t + a3) * t + a2) * t + a1) * t
    return s * (1.0 - poly * jnp.exp(-ax * ax))


def _gelu_exact(x):
    # PyTorch nn.GELU() default: exact erf-based GELU.
    return 0.5 * x * (1.0 + _erf(x * (1.0 / math.sqrt(2.0))))


def _layernorm(x, w, b, eps=1e-5):
    # Statistics always in f32 (x is f32 here); w/b may be bf16.
    mu = jnp.mean(x, axis=-1, keepdims=True)
    xc = x - mu
    var = jnp.mean(xc * xc, axis=-1, keepdims=True)
    return xc * jax.lax.rsqrt(var + eps) * w.astype(jnp.float32) + b.astype(jnp.float32)


# ----------------------- kernel 1: LN1 + fused QKV proj -----------------------

def ln1_qkv_kernel(n_head, x_ref, ln1w_ref, ln1b_ref, wqkv_ref, bqkv_ref,
                   q_ref, k_ref, v_ref):
    cdt = wqkv_ref.dtype                      # MXU operand dtype (bf16 or f32)
    x = x_ref[...].astype(jnp.float32)        # (rows, C)
    rows, C = x.shape
    hd = C // n_head

    h = _layernorm(x, ln1w_ref[...], ln1b_ref[...]).astype(cdt)
    qkv = jnp.dot(h, wqkv_ref[...], preferred_element_type=jnp.float32)
    qkv = qkv + bqkv_ref[...].astype(jnp.float32)                # (rows, 3C)

    q = qkv[:, :C] * (1.0 / math.sqrt(hd))    # fold 1/sqrt(hd) into q once
    k = qkv[:, C:2 * C]
    v = qkv[:, 2 * C:]

    def heads(t):                             # (rows, C) -> (H, rows, hd)
        # Done ONCE per token here (not per (q,kv) pair in the attention loop).
        return t.reshape(rows, n_head, hd).transpose(1, 0, 2)

    q_ref[...] = heads(q).astype(q_ref.dtype)
    k_ref[...] = heads(k).astype(k_ref.dtype)
    v_ref[...] = heads(v).astype(v_ref.dtype)


# ------------- kernel 2: flash causal attention + proj + residual -------------

def attn_kernel(q_tile, kv_tile,
                x_ref, q_ref, k_ref, v_ref, wpr_ref, bpr_ref,
                o_ref, m_sc, l_sc, acc_sc):
    qi = pl.program_id(1)
    ki = pl.program_id(2)
    n_kv = pl.num_programs(2)
    q0 = qi * q_tile
    k0 = ki * kv_tile

    @pl.when(ki == 0)
    def _init():
        m_sc[...] = jnp.full(m_sc.shape, -jnp.inf, dtype=m_sc.dtype)
        l_sc[...] = jnp.zeros(l_sc.shape, dtype=l_sc.dtype)
        acc_sc[...] = jnp.zeros(acc_sc.shape, dtype=acc_sc.dtype)

    # Causal: a key block contributes only if its first key index is <= the
    # last query index of this q tile.  Block ki==0 is never fully masked, so
    # m/l always become finite before finalization (no 0-denominator blowup).
    @pl.when(k0 < q0 + q_tile)
    def _step():
        q = q_ref[...]                        # (H, q_tile, hd), pre-scaled
        k = k_ref[...]                        # (H, kv_tile, hd)
        v = v_ref[...]                        # (H, kv_tile, hd)

        s = jnp.einsum("hqd,hkd->hqk", q, k,
                       preferred_element_type=jnp.float32)        # f32 scores
        row = q0 + jax.lax.broadcasted_iota(jnp.int32, (q_tile, kv_tile), 0)
        col = k0 + jax.lax.broadcasted_iota(jnp.int32, (q_tile, kv_tile), 1)
        s = jnp.where((row >= col)[None, :, :], s, -1e30)

        m_prev = m_sc[...]
        m_new = jnp.maximum(m_prev, jnp.max(s, axis=-1, keepdims=True))
        alpha = jnp.exp(m_prev - m_new)
        p = jnp.exp(s - m_new)
        l_sc[...] = alpha * l_sc[...] + jnp.sum(p, axis=-1, keepdims=True)
        acc_sc[...] = alpha * acc_sc[...] + jnp.einsum(
            "hqk,hkd->hqd", p.astype(v.dtype), v,
            preferred_element_type=jnp.float32)
        m_sc[...] = m_new

    @pl.when(ki == n_kv - 1)
    def _finalize():
        H, qt, hd = acc_sc.shape
        # Normalize AFTER the PV matmuls; EUP approx reciprocal.
        y = acc_sc[...] * pl.reciprocal(l_sc[...], approx=True)    # (H,qt,hd) f32
        y = y.transpose(1, 0, 2).reshape(qt, H * hd)               # (qt, C)
        cdt = wpr_ref.dtype
        att = jnp.dot(y.astype(cdt), wpr_ref[...],
                      preferred_element_type=jnp.float32)
        att = att + bpr_ref[...].astype(jnp.float32)
        # TODO(synk): training-mode resid dropout / ConcreteDropout regularization
        # omitted (eval mode -> identity).
        o_ref[...] = (x_ref[...].astype(jnp.float32) + att).astype(o_ref.dtype)


# ---------------------- kernel 3: LN2 + MLP + residual ------------------------

def ln2_mlp_kernel(x_ref, ln2w_ref, ln2b_ref, wfc_ref, bfc_ref,
                   wfp_ref, bfp_ref, o_ref):
    cdt = wfc_ref.dtype
    x = x_ref[...].astype(jnp.float32)        # (rows, C) residual stream, f32
    h = _layernorm(x, ln2w_ref[...], ln2b_ref[...]).astype(cdt)
    f = jnp.dot(h, wfc_ref[...], preferred_element_type=jnp.float32)
    f = f + bfc_ref[...].astype(jnp.float32)
    f = _gelu_exact(f).astype(cdt)
    f = jnp.dot(f, wfp_ref[...], preferred_element_type=jnp.float32)
    f = f + bfp_ref[...].astype(jnp.float32)
    # TODO(synk): training-mode MLP dropout / ConcreteDropout omitted (eval mode).
    o_ref[...] = (x + f).astype(o_ref.dtype)


# --------------------------------- wrapper ------------------------------------

PARAM_ORDER = ("ln1_w", "ln1_b", "w_qkv", "b_qkv", "w_proj", "b_proj",
               "ln2_w", "ln2_b", "w_fc", "b_fc", "w_fcproj", "b_fcproj")


def _itemsize(dt):
    return jnp.dtype(dt).itemsize


def _pick_tile(T, want):
    """Largest multiple-of-8 divisor of T that is <= want (else T itself)."""
    want = min(max(want, 8), T)
    for t in range(want, 7, -1):
        if T % t == 0 and t % 8 == 0:
            return t
    return T


def _vmem_limit(weight_bytes, block_bytes, extra_bytes):
    """Per-call scoped-VMEM budget: weights (single copy) + double-buffered
    pipelined blocks + intermediates + headroom, clamped below physical."""
    try:
        cap = int(pltpu.get_tpu_info().vmem_capacity_bytes)
    except Exception:
        cap = 64 << 20                      # conservative (v7x per-TC)
    need = int(weight_bytes + 2 * block_bytes + extra_bytes)
    return int(max(32 << 20, min(need + (16 << 20), cap - (16 << 20))))


def _weight_spec(arr, n_grid_axes, single_buffer):
    nd = arr.ndim
    if n_grid_axes == 2:
        im = lambda b, r, _nd=nd: (0,) * _nd
    else:
        im = lambda b, qi, ki, _nd=nd: (0,) * _nd
    if single_buffer:
        # Grid-invariant: one VMEM copy instead of the default double buffer.
        return pl.BlockSpec(arr.shape, im, pipeline_mode=pl.Buffered(1))
    return pl.BlockSpec(arr.shape, im)


def _block_forward_impl(x, params, n_head, q_tile, row_tile, out_dtype,
                        single_buffer_weights):
    B, T, C = x.shape
    assert C % n_head == 0
    hd = C // n_head
    cdt = params["w_qkv"].dtype               # MXU-operand / intermediate dtype
    out_dtype = x.dtype if out_dtype is None else out_dtype

    rt = _pick_tile(T, row_tile)
    qt = _pick_tile(T, q_tile)
    kt = qt
    n_rt, n_qt, n_kt = T // rt, T // qt, T // kt

    def wbytes(names):
        return sum(math.prod(params[n].shape) * _itemsize(params[n].dtype)
                   for n in names)

    w_mult = 1 if single_buffer_weights else 2

    # ---------------- 1) LN1 + QKV projection -> per-head q, k, v ------------
    w1 = ["ln1_w", "ln1_b", "w_qkv", "b_qkv"]
    blk1 = rt * C * _itemsize(x.dtype) + 3 * rt * C * _itemsize(cdt)
    lim1 = _vmem_limit(w_mult * wbytes(w1), blk1, 8 * rt * 3 * C * 4)
    head_shape = jax.ShapeDtypeStruct((B, n_head, T, hd), cdt)

    q_h, k_h, v_h = pl.pallas_call(
        functools.partial(ln1_qkv_kernel, n_head),
        out_shape=(head_shape, head_shape, head_shape),
        grid_spec=pltpu.PrefetchScalarGridSpec(
            num_scalar_prefetch=0,
            grid=(B, n_rt),
            in_specs=[pl.BlockSpec((None, rt, C), lambda b, r: (b, r, 0))]
                     + [_weight_spec(params[n], 2, single_buffer_weights) for n in w1],
            out_specs=[pl.BlockSpec((None, n_head, rt, hd),
                                    lambda b, r: (b, 0, r, 0))] * 3,
        ),
        compiler_params=pltpu.CompilerParams(
            dimension_semantics=("parallel", "parallel"),
            vmem_limit_bytes=lim1),
    )(x, *[params[n] for n in w1])

    # -------- 2) flash causal attention + output projection + residual -------
    w2 = ["w_proj", "b_proj"]
    blk2 = (qt * C * _itemsize(x.dtype)            # residual x block
            + qt * C * 4                           # output block (f32 residual)
            + (qt + 2 * kt) * C * _itemsize(cdt))  # q / k / v head blocks
    extra2 = (2 * n_head * qt * kt * 4             # f32 scores + exp
              + n_head * qt * hd * 4               # acc scratch
              + 2 * n_head * qt * 4                # m, l scratch
              + 4 * qt * C * 4)                    # projection temporaries
    lim2 = _vmem_limit(w_mult * wbytes(w2), blk2, extra2)

    x_attn = pl.pallas_call(
        functools.partial(attn_kernel, qt, kt),
        out_shape=jax.ShapeDtypeStruct((B, T, C), jnp.float32),  # f32 residual stream
        grid_spec=pltpu.PrefetchScalarGridSpec(
            num_scalar_prefetch=0,
            grid=(B, n_qt, n_kt),
            in_specs=[
                pl.BlockSpec((None, qt, C), lambda b, qi, ki: (b, qi, 0)),
                pl.BlockSpec((None, n_head, qt, hd), lambda b, qi, ki: (b, 0, qi, 0)),
                pl.BlockSpec((None, n_head, kt, hd), lambda b, qi, ki: (b, 0, ki, 0)),
                pl.BlockSpec((None, n_head, kt, hd), lambda b, qi, ki: (b, 0, ki, 0)),
                _weight_spec(params["w_proj"], 3, single_buffer_weights),
                _weight_spec(params["b_proj"], 3, single_buffer_weights),
            ],
            out_specs=pl.BlockSpec((None, qt, C), lambda b, qi, ki: (b, qi, 0)),
            scratch_shapes=[pltpu.VMEM((n_head, qt, 1), jnp.float32),   # m
                            pltpu.VMEM((n_head, qt, 1), jnp.float32),   # l
                            pltpu.VMEM((n_head, qt, hd), jnp.float32)], # acc
        ),
        compiler_params=pltpu.CompilerParams(
            dimension_semantics=("parallel", "parallel", "arbitrary"),
            vmem_limit_bytes=lim2),
    )(x, q_h, k_h, v_h, params["w_proj"], params["b_proj"])

    # ----------------------- 3) LN2 + MLP + residual -------------------------
    w3 = ["ln2_w", "ln2_b", "w_fc", "b_fc", "w_fcproj", "b_fcproj"]
    blk3 = rt * C * 4 + rt * C * _itemsize(out_dtype)
    lim3 = _vmem_limit(w_mult * wbytes(w3), blk3, 6 * rt * 4 * C * 4)

    out = pl.pallas_call(
        ln2_mlp_kernel,
        out_shape=jax.ShapeDtypeStruct((B, T, C), out_dtype),
        grid_spec=pltpu.PrefetchScalarGridSpec(
            num_scalar_prefetch=0,
            grid=(B, n_rt),
            in_specs=[pl.BlockSpec((None, rt, C), lambda b, r: (b, r, 0))]
                     + [_weight_spec(params[n], 2, single_buffer_weights) for n in w3],
            out_specs=pl.BlockSpec((None, rt, C), lambda b, r: (b, r, 0)),
        ),
        compiler_params=pltpu.CompilerParams(
            dimension_semantics=("parallel", "parallel"),
            vmem_limit_bytes=lim3),
    )(x_attn, *[params[n] for n in w3])
    return out


def block_forward(x, params, n_head, q_tile=256, row_tile=256, out_dtype=None):
    # q_tile=256 fills the 256x256 MXU on v6e/v7x; prefer 128 on v5e.
    # out_dtype=jnp.bfloat16 halves output writeback for bf16 models.
    try:
        return _block_forward_impl(x, params, n_head, q_tile, row_tile,
                                   out_dtype, single_buffer_weights=True)
    except Exception:
        # Fallback for jax versions without BlockSpec(pipeline_mode=pl.Buffered(1)):
        # identical kernels with default (double-buffered) weight specs.
        return _block_forward_impl(x, params, n_head, q_tile, row_tile,
                                   out_dtype, single_buffer_weights=False)


# ------------------------------ pure-JAX reference ----------------------------

def block_reference(x, p, n_head):
    B, T, C = x.shape
    hd = C // n_head

    def ln(z, w, b):
        mu = z.mean(-1, keepdims=True)
        var = ((z - mu) ** 2).mean(-1, keepdims=True)
        return (z - mu) / jnp.sqrt(var + 1e-5) * w + b

    h = ln(x, p["ln1_w"], p["ln1_b"])
    qkv = h @ p["w_qkv"] + p["b_qkv"]
    q, k, v = jnp.split(qkv, 3, axis=-1)

    def to_heads(t):
        return t.reshape(B, T, n_head, hd).transpose(0, 2, 1, 3)

    q, k, v = to_heads(q), to_heads(k), to_heads(v)
    s = jnp.einsum("bhqd,bhkd->bhqk", q, k) / math.sqrt(hd)
    mask = jnp.tril(jnp.ones((T, T), bool))
    s = jnp.where(mask, s, -jnp.inf)
    a = jax.nn.softmax(s, axis=-1)
    y = jnp.einsum("bhqk,bhkd->bhqd", a, v).transpose(0, 2, 1, 3).reshape(B, T, C)
    y = y @ p["w_proj"] + p["b_proj"]
    x = x + y
    h2 = ln(x, p["ln2_w"], p["ln2_b"])
    f = jax.nn.gelu(h2 @ p["w_fc"] + p["b_fc"], approximate=False)
    f = f @ p["w_fcproj"] + p["b_fcproj"]
    return x + f


# ----------------------------------- main -------------------------------------

if __name__ == "__main__":
    B, T, C, n_head = 2, 8, 32, 4   # small shapes; n_embd % n_head == 0

    key = jax.random.PRNGKey(0)
    ks = jax.random.split(key, 16)

    def nrm(k, shape, scale=0.02):
        return (scale * jax.random.normal(k, shape)).astype(jnp.float32)

    params = {
        "ln1_w": (jnp.ones((1, C)) + nrm(ks[10], (1, C))).astype(jnp.float32),
        "ln1_b": nrm(ks[11], (1, C)),
        "w_qkv": nrm(ks[0], (C, 3 * C)),
        "b_qkv": nrm(ks[1], (1, 3 * C)),
        "w_proj": nrm(ks[2], (C, C)),
        "b_proj": nrm(ks[3], (1, C)),
        "ln2_w": (jnp.ones((1, C)) + nrm(ks[4], (1, C))).astype(jnp.float32),
        "ln2_b": nrm(ks[5], (1, C)),
        "w_fc": nrm(ks[6], (C, 4 * C)),
        "b_fc": nrm(ks[7], (1, 4 * C)),
        "w_fcproj": nrm(ks[8], (4 * C, C)),
        "b_fcproj": nrm(ks[9], (1, C)),
    }

    x = jax.random.normal(ks[12], (B, T, C), jnp.float32)
    ref = block_reference(x, params, n_head)

    # 1) f32 weights: tight correctness check against the f32 reference.
    out = jax.block_until_ready(block_forward(x, params, n_head))
    max_err = float(jnp.max(jnp.abs(out - ref)))
    assert jnp.allclose(out, ref, atol=1e-3, rtol=1e-3), f"f32 max abs err = {max_err}"

    # 2) bf16-resident weights (MXU operands and q/k/v intermediates in bf16,
    #    f32 accumulation / f32 residual stream): loose check — the recommended
    #    production dtype path.
    params_bf16 = {k: v.astype(jnp.bfloat16) for k, v in params.items()}
    out_bf16 = jax.block_until_ready(block_forward(x, params_bf16, n_head))
    max_err_bf16 = float(jnp.max(jnp.abs(out_bf16 - ref)))
    assert jnp.allclose(out_bf16, ref, atol=2e-2, rtol=2e-2), \
        f"bf16 max abs err = {max_err_bf16}"

    print("KERNEL_OK")
</pallas_src>

<mosaic_0001>
module attributes {stable_mosaic.version = 11 : i64} {
  func.func @ln1_qkv_kernel(%arg0: i32, %arg1: i32, %arg2: memref<1x8x32xf32, #tpu.memory_space<vmem>>, %arg3: memref<1x32xf32, #tpu.memory_space<vmem>>, %arg4: memref<1x32xf32, #tpu.memory_space<vmem>>, %arg5: memref<32x96xf32, #tpu.memory_space<vmem>>, %arg6: memref<1x96xf32, #tpu.memory_space<vmem>>, %arg7: memref<1x4x8x8xf32, #tpu.memory_space<vmem>>, %arg8: memref<1x4x8x8xf32, #tpu.memory_space<vmem>>, %arg9: memref<1x4x8x8xf32, #tpu.memory_space<vmem>>) attributes {dimension_semantics = [#tpu.dimension_semantics<parallel>, #tpu.dimension_semantics<parallel>], iteration_bounds = array<i64: 2, 1>, scalar_prefetch = 0 : i64, scratch_operands = 0 : i64, tpu.core_type = #tpu.core_type<tc>, window_params = [{transform_indices = @transform_0, window_bounds = array<i64: 1, 8, 32>}, {pipeline_mode = #tpu.pipeline_mode<synchronous>, transform_indices = @transform_1, window_bounds = array<i64: 1, 32>}, {pipeline_mode = #tpu.pipeline_mode<synchronous>, transform_indices = @transform_2, window_bounds = array<i64: 1, 32>}, {pipeline_mode = #tpu.pipeline_mode<synchronous>, transform_indices = @transform_3, window_bounds = array<i64: 32, 96>}, {pipeline_mode = #tpu.pipeline_mode<synchronous>, transform_indices = @transform_4, window_bounds = array<i64: 1, 96>}, {transform_indices = @transform_5, window_bounds = array<i64: 1, 4, 8, 8>}, {transform_indices = @transform_6, window_bounds = array<i64: 1, 4, 8, 8>}, {transform_indices = @transform_7, window_bounds = array<i64: 1, 4, 8, 8>}]} {
    %c0 = arith.constant 0 : index
    %c0_0 = arith.constant 0 : index
    %c0_1 = arith.constant 0 : index
    %0 = vector.load %arg2[%c0, %c0_0, %c0_1] : memref<1x8x32xf32, #tpu.memory_space<vmem>>, vector<1x8x32xf32>
    %1 = vector.shape_cast %0 : vector<1x8x32xf32> to vector<8x32xf32>
    %c0_2 = arith.constant 0 : index
    %c0_3 = arith.constant 0 : index
    %2 = vector.load %arg3[%c0_2, %c0_3] : memref<1x32xf32, #tpu.memory_space<vmem>>, vector<1x32xf32>
    %c0_4 = arith.constant 0 : index
    %c0_5 = arith.constant 0 : index
    %3 = vector.load %arg4[%c0_4, %c0_5] : memref<1x32xf32, #tpu.memory_space<vmem>>, vector<1x32xf32>
    %cst = arith.constant dense<0.000000e+00> : vector<8xf32>
    %4 = vector.multi_reduction <add>, %1, %cst [1] : vector<8x32xf32> to vector<8xf32>
    %5 = vector.shape_cast %4 : vector<8xf32> to vector<8x1xf32>
    %cst_6 = arith.constant 3.200000e+01 : f32
    %6 = vector.broadcast %cst_6 : f32 to vector<8x1xf32>
    %7 = arith.divf %5, %6 : vector<8x1xf32>
    %8 = vector.broadcast %7 : vector<8x1xf32> to vector<8x32xf32>
    %9 = arith.subf %1, %8 : vector<8x32xf32>
    %10 = arith.mulf %9, %9 : vector<8x32xf32>
    %cst_7 = arith.constant dense<0.000000e+00> : vector<8xf32>
    %11 = vector.multi_reduction <add>, %10, %cst_7 [1] : vector<8x32xf32> to vector<8xf32>
    %12 = vector.shape_cast %11 : vector<8xf32> to vector<8x1xf32>
    %cst_8 = arith.constant 3.200000e+01 : f32
    %13 = vector.broadcast %cst_8 : f32 to vector<8x1xf32>
    %14 = arith.divf %12, %13 : vector<8x1xf32>
    %cst_9 = arith.constant 9.99999974E-6 : f32
    %15 = vector.broadcast %cst_9 : f32 to vector<8x1xf32>
    %16 = arith.addf %14, %15 : vector<8x1xf32>
    %17 = math.rsqrt %16 : vector<8x1xf32>
    %18 = vector.broadcast %17 : vector<8x1xf32> to vector<8x32xf32>
    %19 = arith.mulf %9, %18 : vector<8x32xf32>
    %20 = vector.broadcast %2 : vector<1x32xf32> to vector<8x32xf32>
    %21 = arith.mulf %19, %20 : vector<8x32xf32>
    %22 = vector.broadcast %3 : vector<1x32xf32> to vector<8x32xf32>
    %23 = arith.addf %21, %22 : vector<8x32xf32>
    %c0_10 = arith.constant 0 : index
    %c0_11 = arith.constant 0 : index
    %24 = vector.load %arg5[%c0_10, %c0_11] : memref<32x96xf32, #tpu.memory_space<vmem>>, vector<32x96xf32>
    %cst_12 = arith.constant dense<0.000000e+00> : vector<8x96xf32>
    %25 = tpu.matmul %23, %24, %cst_12 {dimension_numbers = #tpu.dot_dimension_numbers<[1], [0], [0], [1], [0, 0, 1, 1], [], []>} : vector<8x32xf32>, vector<32x96xf32>, vector<8x96xf32> -> vector<8x96xf32>
    %c0_13 = arith.constant 0 : index
    %c0_14 = arith.constant 0 : index
    %26 = vector.load %arg6[%c0_13, %c0_14] : memref<1x96xf32, #tpu.memory_space<vmem>>, vector<1x96xf32>
    %27 = vector.broadcast %26 : vector<1x96xf32> to vector<8x96xf32>
    %28 = arith.addf %25, %27 : vector<8x96xf32>
    %29 = vector.extract_strided_slice %28 {offsets = [0, 0], sizes = [8, 32], strides = [1, 1]} : vector<8x96xf32> to vector<8x32xf32>
    %cst_15 = arith.constant 0.353553385 : f32
    %30 = vector.broadcast %cst_15 : f32 to vector<8x32xf32>
    %31 = arith.mulf %29, %30 : vector<8x32xf32>
    %32 = vector.extract_strided_slice %28 {offsets = [0, 32], sizes = [8, 32], strides = [1, 1]} : vector<8x96xf32> to vector<8x32xf32>
    %33 = vector.extract_strided_slice %28 {offsets = [0, 64], sizes = [8, 32], strides = [1, 1]} : vector<8x96xf32> to vector<8x32xf32>
    %34 = vector.shape_cast %31 : vector<8x32xf32> to vector<8x4x8xf32>
    %35 = tpu.transpose %34, [1, 0, 2] : vector<8x4x8xf32> -> vector<4x8x8xf32>
    %c0_16 = arith.constant 0 : index
    %c0_17 = arith.constant 0 : index
    %c0_18 = arith.constant 0 : index
    %c0_19 = arith.constant 0 : index
    %36 = vector.load %arg7[%c0_16, %c0_17, %c0_18, %c0_19] : memref<1x4x8x8xf32, #tpu.memory_space<vmem>>, vector<1x4x8x8xf32>
    %37 = vector.shape_cast %36 : vector<1x4x8x8xf32> to vector<4x8x8xf32>
    %38 = vector.shape_cast %35 : vector<4x8x8xf32> to vector<1x4x8x8xf32>
    tpu.vector_store %arg7[%c0_16, %c0_17, %c0_18, %c0_19], %38 {strides = array<i32>} : memref<1x4x8x8xf32, #tpu.memory_space<vmem>>, vector<1x4x8x8xf32>,
    %39 = vector.shape_cast %32 : vector<8x32xf32> to vector<8x4x8xf32>
    %40 = tpu.transpose %39, [1, 0, 2] : vector<8x4x8xf32> -> vector<4x8x8xf32>
    %c0_20 = arith.constant 0 : index
    %c0_21 = arith.constant 0 : index
    %c0_22 = arith.constant 0 : index
    %c0_23 = arith.constant 0 : index
    %41 = vector.load %arg8[%c0_20, %c0_21, %c0_22, %c0_23] : memref<1x4x8x8xf32, #tpu.memory_space<vmem>>, vector<1x4x8x8xf32>
    %42 = vector.shape_cast %41 : vector<1x4x8x8xf32> to vector<4x8x8xf32>
    %43 = vector.shape_cast %40 : vector<4x8x8xf32> to vector<1x4x8x8xf32>
    tpu.vector_store %arg8[%c0_20, %c0_21, %c0_22, %c0_23], %43 {strides = array<i32>} : memref<1x4x8x8xf32, #tpu.memory_space<vmem>>, vector<1x4x8x8xf32>,
    %44 = vector.shape_cast %33 : vector<8x32xf32> to vector<8x4x8xf32>
    %45 = tpu.transpose %44, [1, 0, 2] : vector<8x4x8xf32> -> vector<4x8x8xf32>
    %c0_24 = arith.constant 0 : index
    %c0_25 = arith.constant 0 : index
    %c0_26 = arith.constant 0 : index
    %c0_27 = arith.constant 0 : index
    %46 = vector.load %arg9[%c0_24, %c0_25, %c0_26, %c0_27] : memref<1x4x8x8xf32, #tpu.memory_space<vmem>>, vector<1x4x8x8xf32>
    %47 = vector.shape_cast %46 : vector<1x4x8x8xf32> to vector<4x8x8xf32>
    %48 = vector.shape_cast %45 : vector<4x8x8xf32> to vector<1x4x8x8xf32>
    tpu.vector_store %arg9[%c0_24, %c0_25, %c0_26, %c0_27], %48 {strides = array<i32>} : memref<1x4x8x8xf32, #tpu.memory_space<vmem>>, vector<1x4x8x8xf32>,
    return
  }
  func.func @transform_0(%arg0: i32, %arg1: i32) -> (i32, i32, i32) {
    %c0_i32 = arith.constant 0 : i32
    %c0_i32_0 = arith.constant 0 : i32
    return %arg0, %arg1, %c0_i32 : i32, i32, i32
  }
  func.func @transform_1(%arg0: i32, %arg1: i32) -> (i32, i32) {
    %c0_i32 = arith.constant 0 : i32
    %c0_i32_0 = arith.constant 0 : i32
    %c0_i32_1 = arith.constant 0 : i32
    return %c0_i32, %c0_i32_0 : i32, i32
  }
  func.func @transform_2(%arg0: i32, %arg1: i32) -> (i32, i32) {
    %c0_i32 = arith.constant 0 : i32
    %c0_i32_0 = arith.constant 0 : i32
    %c0_i32_1 = arith.constant 0 : i32
    return %c0_i32, %c0_i32_0 : i32, i32
  }
  func.func @transform_3(%arg0: i32, %arg1: i32) -> (i32, i32) {
    %c0_i32 = arith.constant 0 : i32
    %c0_i32_0 = arith.constant 0 : i32
    %c0_i32_1 = arith.constant 0 : i32
    return %c0_i32, %c0_i32_0 : i32, i32
  }
  func.func @transform_4(%arg0: i32, %arg1: i32) -> (i32, i32) {
    %c0_i32 = arith.constant 0 : i32
    %c0_i32_0 = arith.constant 0 : i32
    %c0_i32_1 = arith.constant 0 : i32
    return %c0_i32, %c0_i32_0 : i32, i32
  }
  func.func @transform_5(%arg0: i32, %arg1: i32) -> (i32, i32, i32, i32) {
    %c0_i32 = arith.constant 0 : i32
    %c0_i32_0 = arith.constant 0 : i32
    %c0_i32_1 = arith.constant 0 : i32
    return %arg0, %c0_i32, %arg1, %c0_i32_0 : i32, i32, i32, i32
  }
  func.func @transform_6(%arg0: i32, %arg1: i32) -> (i32, i32, i32, i32) {
    %c0_i32 = arith.constant 0 : i32
    %c0_i32_0 = arith.constant 0 : i32
    %c0_i32_1 = arith.constant 0 : i32
    return %arg0, %c0_i32, %arg1, %c0_i32_0 : i32, i32, i32, i32
  }
  func.func @transform_7(%arg0: i32, %arg1: i32) -> (i32, i32, i32, i32) {
    %c0_i32 = arith.constant 0 : i32
    %c0_i32_0 = arith.constant 0 : i32
    %c0_i32_1 = arith.constant 0 : i32
    return %arg0, %c0_i32, %arg1, %c0_i32_0 : i32, i32, i32, i32
  }
}

module attributes {stable_mosaic.version = 11 : i64} {
  func.func @ln1_qkv_kernel(%arg0: i32, %arg1: i32, %arg2: memref<1x8x32xf32, #tpu.memory_space<vmem>>, %arg3: memref<1x32xf32, #tpu.memory_space<vmem>>, %arg4: memref<1x32xf32, #tpu.memory_space<vmem>>, %arg5: memref<32x96xf32, #tpu.memory_space<vmem>>, %arg6: memref<1x96xf32, #tpu.memory_space<vmem>>, %arg7: memref<1x4x8x8xf32, #tpu.memory_space<vmem>>, %arg8: memref<1x4x8x8xf32, #tpu.memory_space<vmem>>, %arg9: memref<1x4x8x8xf32, #tpu.memory_space<vmem>>) attributes {dimension_semantics = [#tpu.dimension_semantics<parallel>, #tpu.dimension_semantics<parallel>], iteration_bounds = array<i64: 2, 1>, scalar_prefetch = 0 : i64, scratch_operands = 0 : i64, tpu.core_type = #tpu.core_type<tc>, window_params = [{transform_indices = @transform_0, window_bounds = array<i64: 1, 8, 32>}, {pipeline_mode = #tpu.pipeline_mode<synchronous>, transform_indices = @transform_1, window_bounds = array<i64: 1, 32>}, {pipeline_mode = #tpu.pipeline_mode<synchronous>, transform_indices = @transform_2, window_bounds = array<i64: 1, 32>}, {pipeline_mode = #tpu.pipeline_mode<synchronous>, transform_indices = @transform_3, window_bounds = array<i64: 32, 96>}, {pipeline_mode = #tpu.pipeline_mode<synchronous>, transform_indices = @transform_4, window_bounds = array<i64: 1, 96>}, {transform_indices = @transform_5, window_bounds = array<i64: 1, 4, 8, 8>}, {transform_indices = @transform_6, window_bounds = array<i64: 1, 4, 8, 8>}, {transform_indices = @transform_7, window_bounds = array<i64: 1, 4, 8, 8>}]} {
    %c0 = arith.constant 0 : index
    %c0_0 = arith.constant 0 : index
    %c0_1 = arith.constant 0 : index
    %0 = vector.load %arg2[%c0, %c0_0, %c0_1] : memref<1x8x32xf32, #tpu.memory_space<vmem>>, vector<1x8x32xf32>
    %1 = vector.shape_cast %0 : vector<1x8x32xf32> to vector<8x32xf32>
    %c0_2 = arith.constant 0 : index
    %c0_3 = arith.constant 0 : index
    %2 = vector.load %arg3[%c0_2, %c0_3] : memref<1x32xf32, #tpu.memory_space<vmem>>, vector<1x32xf32>
    %c0_4 = arith.constant 0 : index
    %c0_5 = arith.constant 0 : index
    %3 = vector.load %arg4[%c0_4, %c0_5] : memref<1x32xf32, #tpu.memory_space<vmem>>, vector<1x32xf32>
    %cst = arith.constant dense<0.000000e+00> : vector<8xf32>
    %4 = vector.multi_reduction <add>, %1, %cst [1] : vector<8x32xf32> to vector<8xf32>
    %5 = vector.shape_cast %4 : vector<8xf32> to vector<8x1xf32>
    %cst_6 = arith.constant 3.200000e+01 : f32
    %6 = vector.broadcast %cst_6 : f32 to vector<8x1xf32>
    %7 = arith.divf %5, %6 : vector<8x1xf32>
    %8 = vector.broadcast %7 : vector<8x1xf32> to vector<8x32xf32>
    %9 = arith.subf %1, %8 : vector<8x32xf32>
    %10 = arith.mulf %9, %9 : vector<8x32xf32>
    %cst_7 = arith.constant dense<0.000000e+00> : vector<8xf32>
    %11 = vector.multi_reduction <add>, %10, %cst_7 [1] : vector<8x32xf32> to vector<8xf32>
    %12 = vector.shape_cast %11 : vector<8xf32> to vector<8x1xf32>
    %cst_8 = arith.constant 3.200000e+01 : f32
    %13 = vector.broadcast %cst_8 : f32 to vector<8x1xf32>
    %14 = arith.divf %12, %13 : vector<8x1xf32>
    %cst_9 = arith.constant 9.99999974E-6 : f32
    %15 = vector.broadcast %cst_9 : f32 to vector<8x1xf32>
    %16 = arith.addf %14, %15 : vector<8x1xf32>
    %17 = math.rsqrt %16 : vector<8x1xf32>
    %18 = vector.broadcast %17 : vector<8x1xf32> to vector<8x32xf32>
    %19 = arith.mulf %9, %18 : vector<8x32xf32>
    %20 = vector.broadcast %2 : vector<1x32xf32> to vector<8x32xf32>
    %21 = arith.mulf %19, %20 : vector<8x32xf32>
    %22 = vector.broadcast %3 : vector<1x32xf32> to vector<8x32xf32>
    %23 = arith.addf %21, %22 : vector<8x32xf32>
    %c0_10 = arith.constant 0 : index
    %c0_11 = arith.constant 0 : index
    %24 = vector.load %arg5[%c0_10, %c0_11] : memref<32x96xf32, #tpu.memory_space<vmem>>, vector<32x96xf32>
    %cst_12 = arith.constant dense<0.000000e+00> : vector<8x96xf32>
    %25 = tpu.matmul %23, %24, %cst_12 {dimension_numbers = #tpu.dot_dimension_numbers<[1], [0], [0], [1], [0, 0, 1, 1], [], []>} : vector<8x32xf32>, vector<32x96xf32>, vector<8x96xf32> -> vector<8x96xf32>
    %c0_13 = arith.constant 0 : index
    %c0_14 = arith.constant 0 : index
    %26 = vector.load %arg6[%c0_13, %c0_14] : memref<1x96xf32, #tpu.memory_space<vmem>>, vector<1x96xf32>
    %27 = vector.broadcast %26 : vector<1x96xf32> to vector<8x96xf32>
    %28 = arith.addf %25, %27 : vector<8x96xf32>
    %29 = vector.extract_strided_slice %28 {offsets = [0, 0], sizes = [8, 32], strides = [1, 1]} : vector<8x96xf32> to vector<8x32xf32>
    %cst_15 = arith.constant 0.353553385 : f32
    %30 = vector.broadcast %cst_15 : f32 to vector<8x32xf32>
    %31 = arith.mulf %29, %30 : vector<8x32xf32>
    %32 = vector.extract_strided_slice %28 {offsets = [0, 32], sizes = [8, 32], strides = [1, 1]} : vector<8x96xf32> to vector<8x32xf32>
    %33 = vector.extract_strided_slice %28 {offsets = [0, 64], sizes = [8, 32], strides = [1, 1]} : vector<8x96xf32> to vector<8x32xf32>
    %34 = vector.shape_cast %31 : vector<8x32xf32> to vector<8x4x8xf32>
    %35 = tpu.transpose %34, [1, 0, 2] : vector<8x4x8xf32> -> vector<4x8x8xf32>
    %c0_16 = arith.constant 0 : index
    %c0_17 = arith.constant 0 : index
    %c0_18 = arith.constant 0 : index
    %c0_19 = arith.constant 0 : index
    %36 = vector.load %arg7[%c0_16, %c0_17, %c0_18, %c0_19] : memref<1x4x8x8xf32, #tpu.memory_space<vmem>>, vector<1x4x8x8xf32>
    %37 = vector.shape_cast %36 : vector<1x4x8x8xf32> to vector<4x8x8xf32>
    %38 = vector.shape_cast %35 : vector<4x8x8xf32> to vector<1x4x8x8xf32>
    tpu.vector_store %arg7[%c0_16, %c0_17, %c0_18, %c0_19], %38 {strides = array<i32>} : memref<1x4x8x8xf32, #tpu.memory_space<vmem>>, vector<1x4x8x8xf32>,
    %39 = vector.shape_cast %32 : vector<8x32xf32> to vector<8x4x8xf32>
    %40 = tpu.transpose %39, [1, 0, 2] : vector<8x4x8xf32> -> vector<4x8x8xf32>
    %c0_20 = arith.constant 0 : index
    %c0_21 = arith.constant 0 : index
    %c0_22 = arith.constant 0 : index
    %c0_23 = arith.constant 0 : index
    %41 = vector.load %arg8[%c0_20, %c0_21, %c0_22, %c0_23] : memref<1x4x8x8xf32, #tpu.memory_space<vmem>>, vector<1x4x8x8xf32>
    %42 = vector.shape_cast %41 : vector<1x4x8x8xf32> to vector<4x8x8xf32>
    %43 = vector.shape_cast %40 : vector<4x8x8xf32> to vector<1x4x8x8xf32>
    tpu.vector_store %arg8[%c0_20, %c0_21, %c0_22, %c0_23], %43 {strides = array<i32>} : memref<1x4x8x8xf32, #tpu.memory_space<vmem>>, vector<1x4x8x8xf32>,
    %44 = vector.shape_cast %33 : vector<8x32xf32> to vector<8x4x8xf32>
    %45 = tpu.transpose %44, [1, 0, 2] : vector<8x4x8xf32> -> vector<4x8x8xf32>
    %c0_24 = arith.constant 0 : index
    %c0_25 = arith.constant 0 : index
    %c0_26 = arith.constant 0 : index
    %c0_27 = arith.constant 0 : index
    %46 = vector.load %arg9[%c0_24, %c0_25, %c0_26, %c0_27] : memref<1x4x8x8xf32, #tpu.memory_space<vmem>>, vector<1x4x8x8xf32>
    %47 = vector.shape_cast %46 : vector<1x4x8x8xf32> to vector<4x8x8xf32>
    %48 = vector.shape_cast %45 : vector<4x8x8xf32> to vector<1x4x8x8xf32>
    tpu.vector_store %arg9[%c0_24, %c0_25, %c0_26, %c0_27], %48 {strides = array<i32>} : memref<1x4x8x8xf32, #tpu.memory_space<vmem>>, vector<1x4x8x8xf32>,
    return
  }
  func.func @transform_0(%arg0: i32, %arg1: i32) -> (i32, i32, i32) {
    %c0_i32 = arith.constant 0 : i32
    %c0_i32_0 = arith.constant 0 : i32
    return %arg0, %arg1, %c0_i32 : i32, i32, i32
  }
  func.func @transform_1(%arg0: i32, %arg1: i32) -> (i32, i32) {
    %c0_i32 = arith.constant 0 : i32
    %c0_i32_0 = arith.constant 0 : i32
    %c0_i32_1 = arith.constant 0 : i32
    return %c0_i32, %c0_i32_0 : i32, i32
  }
  func.func @transform_2(%arg0: i32, %arg1: i32) -> (i32, i32) {
    %c0_i32 = arith.constant 0 : i32
    %c0_i32_0 = arith.constant 0 : i32
    %c0_i32_1 = arith.constant 0 : i32
    return %c0_i32, %c0_i32_0 : i32, i32
  }
  func.func @transform_3(%arg0: i32, %arg1: i32) -> (i32, i32) {
    %c0_i32 = arith.constant 0 : i32
    %c0_i32_0 = arith.constant 0 : i32
    %c0_i32_1 = arith.constant 0 : i32
    return %c0_i32, %c0_i32_0 : i32, i32
  }
  func.func @transform_4(%arg0: i32, %arg1: i32) -> (i32, i32) {
    %c0_i32 = arith.constant 0 : i32
    %c0_i32_0 = arith.constant 0 : i32
    %c0_i32_1 = arith.constant 0 : i32
    return %c0_i32, %c0_i32_0 : i32, i32
  }
  func.func @transform_5(%arg0: i32, %arg1: i32) -> (i32, i32, i32, i32) {
    %c0_i32 = arith.constant 0 : i32
    %c0_i32_0 = arith.constant 0 : i32
    %c0_i32_1 = arith.constant 0 : i32
    return %arg0, %c0_i32, %arg1, %c0_i32_0 : i32, i32, i32, i32
  }
  func.func @transform_6(%arg0: i32, %arg1: i32) -> (i32, i32, i32, i32) {
    %c0_i32 = arith.constant 0 : i32
    %c0_i32_0 = arith.constant 0 : i32
    %c0_i32_1 = arith.constant 0 : i32
    return %arg0, %c0_i32, %arg1, %c0_i32_0 : i32, i32, i32, i32
  }
  func.func @transform_7(%arg0: i32, %arg1: i32) -> (i32, i32, i32, i32) {
    %c0_i32 = arith.constant 0 : i32
    %c0_i32_0 = arith.constant 0 : i32
    %c0_i32_1 = arith.constant 0 : i32
    return %arg0, %c0_i32, %arg1, %c0_i32_0 : i32, i32, i32, i32
  }
}

</mosaic_0001>

<llo_original>
// kernel: tpu_custom_call.1
$region0: #{tpu_custom_call.1}
  #allocation0 [shape = 'u32[]', space=smem, size = 0x4, offset = 0x4, fixed_abs, tag = 'smem constant byte address 0x4 - core index']
  #allocation1 [shape = 'u32[144,128]{1,0:T(1,128)}', space=vmem, size = 0x12000, scoped, tag = 'internal scratch']
  %s0 = inlined_call_operand.hbm [shape: f32[2,8,32], index: 0, kind: input, shape index: {}]
  %s1 = inlined_call_operand.vmem [shape: f32[1,32], index: 1, kind: input, shape index: {}]
  %s2 = inlined_call_operand.vmem [shape: f32[1,32], index: 2, kind: input, shape index: {}]
  %s3 = inlined_call_operand.hbm [shape: f32[32,96], index: 3, kind: input, shape index: {}]
  %s4 = inlined_call_operand.vmem [shape: f32[1,96], index: 4, kind: input, shape index: {}]
  %s5 = inlined_call_operand.hbm [shape: f32[2,4,8,8], index: 5, kind: output, shape index: {0}]
  %s6 = inlined_call_operand.hbm [shape: f32[2,4,8,8], index: 6, kind: output, shape index: {1}]
  %s7 = inlined_call_operand.hbm [shape: f32[2,4,8,8], index: 7, kind: output, shape index: {2}]
  %8 = xla_tuple %s5, %s6, %s7
  %s9 = sld [smem:[#allocation0]]
  $region77: #{tpu_custom_call.1} parent=0
    _
  %s11 = ssub.s32 1, %s9
  %s12 = scalar_select 0, %s11, %s9
  $region1: #{tpu_custom_call.1} parent=0
    #allocation2 [shape = 'u8[8192]{0}', space=vmem, size = 0x2000, scoped, tag = 'input window, operand 0']
    #allocation3 [shape = 's32[2]{0}', space=sflag, size = 0x8, scoped, tag = 'scoped memory for tpu_custom_call.1']
    #allocation4 [shape = 's32[2]{0}', space=sflag, size = 0x8, scoped, tag = 'scoped memory for tpu_custom_call.1']
    #allocation5 [shape = 'u8[16384]{0}', space=vmem, size = 0x4000, scoped, tag = 'input window, operand 3, single buffered']
    #allocation6 [shape = 's32[1]{0}', space=sflag, size = 0x4, scoped, tag = 'scoped memory for tpu_custom_call.1']
    #allocation7 [shape = 'u8[32768]{0}', space=vmem, size = 0x8000, scoped, tag = 'output window, operand 0']
    #allocation8 [shape = 'u8[32768]{0}', space=vmem, size = 0x8000, scoped, tag = 'output window, operand 1']
    #allocation9 [shape = 's32[2]{0}', space=sflag, size = 0x8, scoped, tag = 'scoped memory for tpu_custom_call.1']
    #allocation10 [shape = 'u8[32768]{0}', space=vmem, size = 0x8000, scoped, tag = 'output window, operand 2']
    %13 = vsyncpa [#allocation3], 0
    %s14 = scalar_lea.sflag [#allocation3], 1
    %15 = vsyncpa %s14, 0
    %16 = vsyncpa [#allocation6], 0
    %17 = vsyncpa [#allocation4], 0
    %s18 = scalar_lea.sflag [#allocation4], 1
    %19 = vsyncpa %s18, 0
    %20 = vsyncpa [#allocation9], 0
    %s21 = scalar_lea.sflag [#allocation9], 1
    %22 = vsyncpa %s21, 0
    loop: start=0, step=1, limit=4
    $region2: #{tpu_custom_call.1} parent=1 // loop_pre_header
      _
    $region3: #{tpu_custom_call.1} parent=1 // loop_header
      %s24 = sphi 0, %s28
      %p25 = scmp.ge.s32.totalorder %s24, 4
      %s31 = sphi 0, %s43
      %s32 = sphi 0, %s39
      %s33 = sphi 0, %s31
      %s34 = sphi 0, %s32
      %s35 = sphi 0, %s33
      %s36 = sphi 0, %s34
      %s48 = sphi 0, %s50
      %s51 = sphi 0, %s48
      %s52 = sphi 0, %s51
      %s68 = sphi 0, %s52
      %s72 = sphi 0, %s72
      %s74 = sphi 0, %s72
      %s75 = sphi 0, %s74
      %s89 = sphi 0, %s75
      %s93 = sphi 0, %s93
      %s95 = sphi 0, %s93
      %s96 = sphi 0, %s95
      %s110 = sphi 0, %s96
      %s114 = sphi 0, %s114
      %s116 = sphi 0, %s114
      %s117 = sphi 0, %s116
      %s131 = sphi 0, %s117
      %s135 = sphi 0, %s135
      %s137 = sphi 0, %s135
      %s138 = sphi 0, %s137
      %s152 = sphi 0, %s138
      %s160 = sphi 0, %s162
      %s163 = sphi 0, %s160
      %s164 = sphi 0, %s163
      %s180 = sphi 0, %s164
      %s188 = sphi 0, %s190
      %s191 = sphi 0, %s188
      %s192 = sphi 0, %s191
      %s208 = sphi 0, %s192
      %s216 = sphi 0, %s218
      %s219 = sphi 0, %s216
      %s220 = sphi 0, %s219
      %s236 = sphi 0, %s220
    $region4: #{tpu_custom_call.1} parent=1 // loop_header_branch
      %27 = sbr.rel (%p25) target = $region8
    $region5: #{tpu_custom_call.1} parent=1 // loop_body
      %s29 = ssub.s32 %s24, 1
      %s30 = ssub.s32 %s24, 2
      %s37 = sadd.s32 1, %s32
      %p38 = scmp.ge.s32.totalorder %s37, 1
      %s39 = scalar_select %p38, 0, %s37
      %s40 = sadd.s32 1, %s31
      %s41 = scalar_select %p38, %s40, %s31
      %p42 = scmp.ge.s32.totalorder %s41, 2
      %s43 = scalar_select %p42, 0, %s41
      %s44 = ssub.s32 %s31, %s43
      %s45 = ssub.s32 %s32, %s39
      %s46 = sor.u32 %s44, %s45
      %p47 = scmp.eq.s32.totalorder %s46, 0
      %s49 = sadd.s32 %s48, 1
      %s50 = scalar_select %p47, %s48, %s49
      %p53 = pneg %p47
      %p54 = scmp.eq.s32.totalorder %s24, 1
      %p55 = por %p53, %p54
      %p56 = scmp.ne.s32.totalorder %s48, %s51
      %p57 = scmp.eq.s32.totalorder %s24, 0
      %p58 = por %p56, %p57
      %p59 = scmp.ne.s32.totalorder %s48, %s51
      %p60 = scmp.eq.s32.totalorder %s29, 1
      %p61 = por %p59, %p60
      %p62 = scmp.ne.s32.totalorder %s51, %s52
      %p63 = scmp.eq.s32.totalorder %s29, 0
      %p64 = por %p62, %p63
      %p65 = scmp.ne.s32.totalorder %s51, %s52
      %p66 = scmp.eq.s32.totalorder %s30, 1
      %p67 = por %p65, %p66
      %p69 = scmp.ne.s32.totalorder %s52, %s68
      %p70 = scmp.eq.s32.totalorder %s30, 0
      %p71 = por %p69, %p70
      %s73 = sadd.s32 %s72, 1
      %p76 = scmp.eq.s32.totalorder %s24, 1
      %p77 = scmp.ne.s32.totalorder %s72, %s74
      %p78 = scmp.eq.s32.totalorder %s24, 0
      %p79 = por %p77, %p78
      %p80 = scmp.ne.s32.totalorder %s72, %s74
      %p81 = scmp.eq.s32.totalorder %s29, 1
      %p82 = por %p80, %p81
      %p83 = scmp.ne.s32.totalorder %s74, %s75
      %p84 = scmp.eq.s32.totalorder %s29, 0
      %p85 = por %p83, %p84
      %p86 = scmp.ne.s32.totalorder %s74, %s75
      %p87 = scmp.eq.s32.totalorder %s30, 1
      %p88 = por %p86, %p87
      %p90 = scmp.ne.s32.totalorder %s75, %s89
      %p91 = scmp.eq.s32.totalorder %s30, 0
      %p92 = por %p90, %p91
      %s94 = sadd.s32 %s93, 1
      %p97 = scmp.eq.s32.totalorder %s24, 1
      %p98 = scmp.ne.s32.totalorder %s93, %s95
      %p99 = scmp.eq.s32.totalorder %s24, 0
      %p100 = por %p98, %p99
      %p101 = scmp.ne.s32.totalorder %s93, %s95
      %p102 = scmp.eq.s32.totalorder %s29, 1
      %p103 = por %p101, %p102
      %p104 = scmp.ne.s32.totalorder %s95, %s96
      %p105 = scmp.eq.s32.totalorder %s29, 0
      %p106 = por %p104, %p105
      %p107 = scmp.ne.s32.totalorder %s95, %s96
      %p108 = scmp.eq.s32.totalorder %s30, 1
      %p109 = por %p107, %p108
      %p111 = scmp.ne.s32.totalorder %s96, %s110
      %p112 = scmp.eq.s32.totalorder %s30, 0
      %p113 = por %p111, %p112
      %s115 = sadd.s32 %s114, 1
      %p118 = scmp.eq.s32.totalorder %s24, 1
      %p119 = scmp.ne.s32.totalorder %s114, %s116
      %p120 = scmp.eq.s32.totalorder %s24, 0
      %p121 = por %p119, %p120
      %p122 = scmp.ne.s32.totalorder %s114, %s116
      %p123 = scmp.eq.s32.totalorder %s29, 1
      %p124 = por %p122, %p123
      %p125 = scmp.ne.s32.totalorder %s116, %s117
      %p126 = scmp.eq.s32.totalorder %s29, 0
      %p127 = por %p125, %p126
      %p128 = scmp.ne.s32.totalorder %s116, %s117
      %p129 = scmp.eq.s32.totalorder %s30, 1
      %p130 = por %p128, %p129
      %p132 = scmp.ne.s32.totalorder %s117, %s131
      %p133 = scmp.eq.s32.totalorder %s30, 0
      %p134 = por %p132, %p133
      %s136 = sadd.s32 %s135, 1
      %p139 = scmp.eq.s32.totalorder %s24, 1
      %p140 = scmp.ne.s32.totalorder %s135, %s137
      %p141 = scmp.eq.s32.totalorder %s24, 0
      %p142 = por %p140, %p141
      %p143 = scmp.ne.s32.totalorder %s135, %s137
      %p144 = scmp.eq.s32.totalorder %s29, 1
      %p145 = por %p143, %p144
      %p146 = scmp.ne.s32.totalorder %s137, %s138
      %p147 = scmp.eq.s32.totalorder %s29, 0
      %p148 = por %p146, %p147
      %p149 = scmp.ne.s32.totalorder %s137, %s138
      %p150 = scmp.eq.s32.totalorder %s30, 1
      %p151 = por %p149, %p150
      %p153 = scmp.ne.s32.totalorder %s138, %s152
      %p154 = scmp.eq.s32.totalorder %s30, 0
      %p155 = por %p153, %p154
      %s156 = ssub.s32 %s31, %s43
      %s157 = ssub.s32 %s32, %s39
      %s158 = sor.u32 %s156, %s157
      %p159 = scmp.eq.s32.totalorder %s158, 0
      %s161 = sadd.s32 %s160, 1
      %s162 = scalar_select %p159, %s160, %s161
      %p165 = pneg %p159
      %p166 = scmp.eq.s32.totalorder %s24, 1
      %p167 = por %p165, %p166
      %p168 = scmp.ne.s32.totalorder %s160, %s163
      %p169 = scmp.eq.s32.totalorder %s24, 0
      %p170 = por %p168, %p169
      %p171 = scmp.ne.s32.totalorder %s160, %s163
      %p172 = scmp.eq.s32.totalorder %s29, 1
      %p173 = por %p171, %p172
      %p174 = scmp.ne.s32.totalorder %s163, %s164
      %p175 = scmp.eq.s32.totalorder %s29, 0
      %p176 = por %p174, %p175
      %p177 = scmp.ne.s32.totalorder %s163, %s164
      %p178 = scmp.eq.s32.totalorder %s30, 1
      %p179 = por %p177, %p178
      %p181 = scmp.ne.s32.totalorder %s164, %s180
      %p182 = scmp.eq.s32.totalorder %s30, 0
      %p183 = por %p181, %p182
      %s184 = ssub.s32 %s31, %s43
      %s185 = ssub.s32 %s32, %s39
      %s186 = sor.u32 %s184, %s185
      %p187 = scmp.eq.s32.totalorder %s186, 0
      %s189 = sadd.s32 %s188, 1
      %s190 = scalar_select %p187, %s188, %s189
      %p193 = pneg %p187
      %p194 = scmp.eq.s32.totalorder %s24, 1
      %p195 = por %p193, %p194
      %p196 = scmp.ne.s32.totalorder %s188, %s191
      %p197 = scmp.eq.s32.totalorder %s24, 0
      %p198 = por %p196, %p197
      %p199 = scmp.ne.s32.totalorder %s188, %s191
      %p200 = scmp.eq.s32.totalorder %s29, 1
      %p201 = por %p199, %p200
      %p202 = scmp.ne.s32.totalorder %s191, %s192
      %p203 = scmp.eq.s32.totalorder %s29, 0
      %p204 = por %p202, %p203
      %p205 = scmp.ne.s32.totalorder %s191, %s192
      %p206 = scmp.eq.s32.totalorder %s30, 1
      %p207 = por %p205, %p206
      %p209 = scmp.ne.s32.totalorder %s192, %s208
      %p210 = scmp.eq.s32.totalorder %s30, 0
      %p211 = por %p209, %p210
      %s212 = ssub.s32 %s31, %s43
      %s213 = ssub.s32 %s32, %s39
      %s214 = sor.u32 %s212, %s213
      %p215 = scmp.eq.s32.totalorder %s214, 0
      %s217 = sadd.s32 %s216, 1
      %s218 = scalar_select %p215, %s216, %s217
      %p221 = pneg %p215
      %p222 = scmp.eq.s32.totalorder %s24, 1
      %p223 = por %p221, %p222
      %p224 = scmp.ne.s32.totalorder %s216, %s219
      %p225 = scmp.eq.s32.totalorder %s24, 0
      %p226 = por %p224, %p225
      %p227 = scmp.ne.s32.totalorder %s216, %s219
      %p228 = scmp.eq.s32.totalorder %s29, 1
      %p229 = por %p227, %p228
      %p230 = scmp.ne.s32.totalorder %s219, %s220
      %p231 = scmp.eq.s32.totalorder %s29, 0
      %p232 = por %p230, %p231
      %p233 = scmp.ne.s32.totalorder %s219, %s220
      %p234 = scmp.eq.s32.totalorder %s30, 1
      %p235 = por %p233, %p234
      %p237 = scmp.ne.s32.totalorder %s220, %s236
      %p238 = scmp.eq.s32.totalorder %s30, 0
      %p239 = por %p237, %p238
      %p240 = scmp.le.s32.totalorder 1, %s24
      %p241 = scmp.lt.s32.totalorder %s24, 3
      %p242 = pnand %p240, %p241
      %p243 = pneg %p242
      // Predicated region
      $region9: #{tpu_custom_call.1} parent=5 // pred_check
        _
      $region10: #{tpu_custom_call.1} parent=5 // pred_check_branch
        %245 = sbr.rel (%p242) target = $region12
      $region11: #{tpu_custom_call.1} parent=5 // pred_region
        %s246 = ssub.s32 %s24, 1
        // Predicated region
        $region13: #{tpu_custom_call.1} parent=11 // pred_check
          %p247 = pneg %p85
        $region14: #{tpu_custom_call.1} parent=11 // pred_check_branch
          %249 = sbr.rel (%p247) target = $region16
        $region15: #{tpu_custom_call.1} parent=11 // pred_region
          _
        $region16: #{tpu_custom_call.1} parent=11 // pred_fallthru
          _
        // Predicated region
        $region17: #{tpu_custom_call.1} parent=11 // pred_check
          %p250 = pneg %p106
        $region18: #{tpu_custom_call.1} parent=11 // pred_check_branch
          %252 = sbr.rel (%p250) target = $region20
        $region19: #{tpu_custom_call.1} parent=11 // pred_region
          _
        $region20: #{tpu_custom_call.1} parent=11 // pred_fallthru
          _
        // Predicated region
        $region21: #{tpu_custom_call.1} parent=11 // pred_check
          %p253 = pneg %p127
        $region22: #{tpu_custom_call.1} parent=11 // pred_check_branch
          %255 = sbr.rel (%p253) target = $region24
        $region23: #{tpu_custom_call.1} parent=11 // pred_region
          %s257 = ssub.s32 512, 512
          %258 = vsyncadd [#allocation6], %s257
          %s259 = sshll.u32 [#allocation5], 4
          %s260 = int_to_ptr.vmem [resolvable:$true] %s259
          %265 = dma.hbm_to_vmem [thread:$0]  %s3, 512, %s260, [#allocation6], 128, 128, 8
        $region24: #{tpu_custom_call.1} parent=11 // pred_fallthru
          _
        // Predicated region
        $region25: #{tpu_custom_call.1} parent=11 // pred_check
          %p266 = pneg %p148
        $region26: #{tpu_custom_call.1} parent=11 // pred_check_branch
          %268 = sbr.rel (%p266) target = $region28
        $region27: #{tpu_custom_call.1} parent=11 // pred_region
          _
        $region28: #{tpu_custom_call.1} parent=11 // pred_fallthru
          _
      $region12: #{tpu_custom_call.1} parent=5 // pred_fallthru
        _
      %p269 = scmp.lt.s32.totalorder %s24, 2
      // Predicated region
      $region29: #{tpu_custom_call.1} parent=5 // pred_check
        %p270 = pneg %p269
      $region30: #{tpu_custom_call.1} parent=5 // pred_check_branch
        %272 = sbr.rel (%p270) target = $region32
      $region31: #{tpu_custom_call.1} parent=5 // pred_region
        // Predicated region
        $region33: #{tpu_custom_call.1} parent=31 // pred_check
          %p273 = pneg %p58
        $region34: #{tpu_custom_call.1} parent=31 // pred_check_branch
          %275 = sbr.rel (%p273) target = $region36
        $region35: #{tpu_custom_call.1} parent=31 // pred_region
          %s276 = sand.u32 %s48, 1
          %s277 = scalar_lea.sflag [#allocation3], %s276
          %s278 = sand.u32 %s48, 1
          %s279 = smul.addr %s278, 8
          %s280 = scalar_lea.vmem [#allocation2], %s279
          %s282 = ssub.s32 128, 128
          %283 = vsyncadd %s277, %s282
          %s284 = sadd.s32 %s32, %s31
          %s285 = smul.addr %s284, 128
          %s286 = scalar_lea.hbm %s0, %s285
          %s288 = sshll.u32 %s280, 4
          %s289 = int_to_ptr.vmem [resolvable:$true] %s288
          %291 = dma.hbm_to_vmem [thread:$0]  %s286, 128, %s289, %s277
        $region36: #{tpu_custom_call.1} parent=31 // pred_fallthru
          _
      $region32: #{tpu_custom_call.1} parent=5 // pred_fallthru
        _
      %p292 = scmp.le.s32.totalorder 1, %s24
      %p293 = scmp.lt.s32.totalorder %s24, 3
      %p294 = pnand %p292, %p293
      %p295 = pneg %p294
      // Predicated region
      $region37: #{tpu_custom_call.1} parent=5 // pred_check
        _
      $region38: #{tpu_custom_call.1} parent=5 // pred_check_branch
        %297 = sbr.rel (%p294) target = $region40
      $region39: #{tpu_custom_call.1} parent=5 // pred_region
        %s298 = ssub.s32 %s24, 1
        %s299 = sand.u32 %s51, 1
        %s300 = scalar_lea.sflag [#allocation3], %s299
        %s301 = sand.u32 %s51, 1
        %s302 = smul.addr %s301, 8
        %s303 = scalar_lea.vmem [#allocation2], %s302
        // Predicated region
        $region41: #{tpu_custom_call.1} parent=39 // pred_check
          %p304 = pneg %p64
        $region42: #{tpu_custom_call.1} parent=39 // pred_check_branch
          %306 = sbr.rel (%p304) target = $region44
        $region43: #{tpu_custom_call.1} parent=39 // pred_region
          %307 = dma.done %s300, 128
        $region44: #{tpu_custom_call.1} parent=39 // pred_fallthru
          _
        // Predicated region
        $region45: #{tpu_custom_call.1} parent=39 // pred_check
          %p308 = pneg %p127
        $region46: #{tpu_custom_call.1} parent=39 // pred_check_branch
          %310 = sbr.rel (%p308) target = $region48
        $region47: #{tpu_custom_call.1} parent=39 // pred_region
          %311 = dma.done [#allocation6], 512
        $region48: #{tpu_custom_call.1} parent=39 // pred_fallthru
          _
        %s312 = sand.u32 %s51, 1
        %s313 = scalar_lea.sflag [#allocation3], %s312
        %s314 = sand.u32 %s51, 1
        %s315 = smul.addr %s314, 8
        %s316 = scalar_lea.vmem [#allocation2], %s315
        %p317 = pneg %p64
        %p318 = pneg %p61
        %p319 = pneg %p85
        %p320 = pneg %p82
        %p321 = pneg %p106
        %p322 = pneg %p103
        %p323 = pneg %p127
        %p324 = pneg %p124
        %p325 = pneg %p148
        %p326 = pneg %p145
        %p327 = pneg %p176
        %p328 = pneg %p173
        %s329 = sand.u32 %s163, 1
        %s330 = scalar_lea.sflag [#allocation4], %s329
        %s331 = sand.u32 %s163, 1
        %s332 = smul.addr %s331, 32
        %s333 = scalar_lea.vmem [#allocation7], %s332
        %p334 = pneg %p204
        %p335 = pneg %p201
        %s336 = sand.u32 %s29, 1
        %s337 = scalar_lea.sflag [#allocation9], %s336
        %s338 = sand.u32 %s191, 1
        %s339 = smul.addr %s338, 32
        %s340 = scalar_lea.vmem [#allocation8], %s339
        %p341 = pneg %p232
        %p342 = pneg %p229
        %s343 = sand.u32 %s29, 1
        %s344 = scalar_lea.sflag [#allocation9], %s343
        %s345 = sand.u32 %s219, 1
        %s346 = smul.addr %s345, 32
        %s347 = scalar_lea.vmem [#allocation10], %s346
        %v348 = vld [vmem:[%s303] sm:$0xff]
        %v349 = vld [vmem:[%s1] sm:$0x1]
        %v350 = vld [vmem:[%s2] sm:$0x1]
        %vm351 = vcmask 261120
        %v352 = vsel %vm351, %v348, 0.0
        %353 = vadd.xlane.f32.xlu0 %v352
        %v354 = vpop.xlane.xlu0 %353
        %v355 = vrcp.pop 32.0
        %v356 = vmul.f32 %v354, %v355
        %v357 = vsub.f32 %v348, %v356
        %v358 = vmul.f32 %v357, %v357
        %v359 = vsel %vm351, %v358, 0.0
        %360 = vadd.xlane.f32.xlu0 %v359
        %v361 = vpop.xlane.xlu0 %360
        %v362 = vmul.f32 %v361, %v355
        %v363 = vadd.f32 %v362, 1e-05
        %v364 = vrsqrt.pop %v363
        %v365 = vmul.f32 %v357, %v364
        %v367 = vlaneseq
        %v368 = vshrl.u32 %v367, 7
        %v369 = vsub.s32 0, %v368
        %v370 = vrot.slane %v349, %v369
        %v372 = vmul.f32 %v365, %v370
        %v374 = vlaneseq
        %v375 = vshrl.u32 %v374, 7
        %v376 = vsub.s32 0, %v375
        %v377 = vrot.slane %v350, %v376
        %v379 = vadd.f32 %v372, %v377
        %v380 = vld [vmem:[#allocation5] sm:$0xff]
        %v381 = vld [vmem:[#allocation5 + $0x8] sm:$0xff]
        %v382 = vld [vmem:[#allocation5 + $0x10] sm:$0xff]
        %v383 = vld [vmem:[#allocation5 + $0x18] sm:$0xff]
        %v384 = vld [vmem:[%s4] sm:$0x1]
        %v386 = vlaneseq
        %v387 = vshrl.u32 %v386, 7
        %v388 = vsub.s32 0, %v387
        %v389 = vrot.slane %v384, %v388
        %v392 = vsel %vm351, %v379, 0
        %394 = vmatprep.subr.mxu0 0.0
        %395 = vmatpush1.msra.mxu0 0.0
        %396 = vmatprep.subr.mxu0 0.0
        %397 = vmatpush1.msra.mxu0 0.0
        %398 = vmatprep.subr.mxu0 0.0
        %399 = vmatpush1.msra.mxu0 0.0
        %400 = vmatprep.subr.mxu0 0.0
        %401 = vmatpush1.msra.mxu0 0.0
        %402 = vmatprep.subr.mxu0 0.0
        %403 = vmatpush1.msra.mxu0 0.0
        %404 = vmatprep.subr.mxu0 0.0
        %405 = vmatpush1.msra.mxu0 0.0
        %406 = vmatprep.subr.mxu0 0.0
        %407 = vmatpush1.msra.mxu0 0.0
        %408 = vmatprep.subr.mxu0 0.0
        %409 = vmatpush1.msra.mxu0 0.0
        %410 = vmatprep.subr.mxu0 0.0
        %411 = vmatpush1.msra.mxu0 0.0
        %412 = vmatprep.subr.mxu0 0.0
        %413 = vmatpush1.msra.mxu0 0.0
        %414 = vmatprep.subr.mxu0 0.0
        %415 = vmatpush1.msra.mxu0 0.0
        %416 = vmatprep.subr.mxu0 0.0
        %417 = vmatpush1.msra.mxu0 0.0
        %418 = vmatprep.subr.mxu0 0.0
        %419 = vmatpush1.msra.mxu0 %v383
        %420 = vmatprep.subr.mxu0 0.0
        %421 = vmatpush1.msra.mxu0 %v382
        %422 = vmatprep.subr.mxu0 0.0
        %423 = vmatpush1.msra.mxu0 %v381
        %424 = vmatprep.subr.mxu0 0.0
        %425 = vmatpush1.msra.mxu0 %v380
        %426 = vmatprep.subr.mxu0 0.0
        %427 = vmatpush2.msra.mxu0 0.0
        %428 = vmatprep.subr.mxu0 0.0
        %429 = vmatpush2.msra.mxu0 0.0
        %430 = vmatprep.subr.mxu0 0.0
        %431 = vmatpush2.msra.mxu0 0.0
        %432 = vmatprep.subr.mxu0 0.0
        %433 = vmatpush2.msra.mxu0 0.0
        %434 = vmatprep.subr.mxu0 0.0
        %435 = vmatpush2.msra.mxu0 0.0
        %436 = vmatprep.subr.mxu0 0.0
        %437 = vmatpush2.msra.mxu0 0.0
        %438 = vmatprep.subr.mxu0 0.0
        %439 = vmatpush2.msra.mxu0 0.0
        %440 = vmatprep.subr.mxu0 0.0
        %441 = vmatpush2.msra.mxu0 0.0
        %442 = vmatprep.subr.mxu0 0.0
        %443 = vmatpush2.msra.mxu0 0.0
        %444 = vmatprep.subr.mxu0 0.0
        %445 = vmatpush2.msra.mxu0 0.0
        %446 = vmatprep.subr.mxu0 0.0
        %447 = vmatpush2.msra.mxu0 0.0
        %448 = vmatprep.subr.mxu0 0.0
        %449 = vmatpush2.msra.mxu0 0.0
        %450 = vmatprep.subr.mxu0 0.0
        %451 = vmatpush2.msra.mxu0 0.0
        %452 = vmatprep.subr.mxu0 0.0
        %453 = vmatpush2.msra.mxu0 0.0
        %454 = vmatprep.subr.mxu0 0.0
        %455 = vmatpush2.msra.mxu0 0.0
        %456 = vmatprep.subr.mxu0 0.0
        %457 = vmatpush2.msra.mxu0 0.0
        %458 = vmatprep.mubr.f32.mxu0 0.0
        %459 = vmatmul.mubr.f32.gmra.mxu0 %v392
        %v460 = vpop.f32.mrf.mxu0
        %v461 = vadd.f32 %v389, %v460
        %v462 = vpop.f32.mrf.mxu0
        %463 = vdwg.mxu0
        %v464 = vmul.f32 %v461, 0.35355338
        %466 = vrot.lane.b32.xlu0 %v464, 120
        %v467 = vpop.permute.xlu0 %466
        %469 = vrot.lane.b32.xlu0 %v464, 112
        %v470 = vpop.permute.xlu0 %469
        %472 = vrot.lane.b32.xlu0 %v464, 104
        %v473 = vpop.permute.xlu0 %472
        %v475 = vcombine.low %v464, %v470
        %v476 = vcombine.high %v464, %v470
        %v478 = vunpack.c.l.s4 1983009808
        %v479 = vunpack.c.0.s8 %v478
        %v480 = vlaneseq
        %v481 = vshrl.u32 %v480, 7
        %v482 = vsub.s32 %v479, %v481
        %v483 = vrot.slane %v475, %v482
        %v485 = vunpack.c.l.s4 1983009808
        %v486 = vunpack.c.0.s8 %v485
        %v487 = vlaneseq
        %v488 = vshrl.u32 %v487, 7
        %v489 = vsub.s32 %v486, %v488
        %v490 = vrot.slane %v476, %v489
        %v491 = vcombine.low %v467, %v473
        %v492 = vcombine.high %v467, %v473
        %v494 = vunpack.c.l.s4 1983009808
        %v495 = vunpack.c.0.s8 %v494
        %v496 = vlaneseq
        %v497 = vshrl.u32 %v496, 7
        %v498 = vsub.s32 %v495, %v497
        %v499 = vrot.slane %v491, %v498
        %v501 = vunpack.c.l.s4 1983009808
        %v502 = vunpack.c.0.s8 %v501
        %v503 = vlaneseq
        %v504 = vshrl.u32 %v503, 7
        %v505 = vsub.s32 %v502, %v504
        %v506 = vrot.slane %v492, %v505
        %v507 = vcombine.low %v483, %v499
        %v508 = vcombine.high %v483, %v499
        %v510 = vunpack.c.l.s4 1934713408
        %v511 = vunpack.c.0.s8 %v510
        %v512 = vlaneseq
        %v513 = vshrl.u32 %v512, 7
        %v514 = vsub.s32 %v511, %v513
        %v515 = vrot.slane %v507, %v514
        %v517 = vunpack.c.l.s4 1934713408
        %v518 = vunpack.c.0.s8 %v517
        %v519 = vlaneseq
        %v520 = vshrl.u32 %v519, 7
        %v521 = vsub.s32 %v518, %v520
        %v522 = vrot.slane %v508, %v521
        %v523 = vcombine.low %v490, %v506
        %v524 = vcombine.high %v490, %v506
        %v526 = vunpack.c.l.s4 1934713408
        %v527 = vunpack.c.0.s8 %v526
        %v528 = vlaneseq
        %v529 = vshrl.u32 %v528, 7
        %v530 = vsub.s32 %v527, %v529
        %v531 = vrot.slane %v523, %v530
        %v533 = vunpack.c.l.s4 1934713408
        %v534 = vunpack.c.0.s8 %v533
        %v535 = vlaneseq
        %v536 = vshrl.u32 %v535, 7
        %v537 = vsub.s32 %v534, %v536
        %v538 = vrot.slane %v524, %v537
        %v539 = vcombine.high %v515, 0.0
        %v540 = vcombine.high %v522, 0.0
        %v541 = vcombine.high %v531, 0.0
        %v542 = vcombine.high %v538, 0.0
        %v543 = vcombine.low %v515, %v522
        %v545 = vunpack.c.l.s4 1983009808
        %v546 = vunpack.c.0.s8 %v545
        %v547 = vlaneseq
        %v548 = vshrl.u32 %v547, 7
        %v549 = vsub.s32 %v546, %v548
        %v550 = vrot.slane %v543, %v549
        %v551 = vcombine.low %v539, %v540
        %v553 = vunpack.c.l.s4 1983009808
        %v554 = vunpack.c.0.s8 %v553
        %v555 = vlaneseq
        %v556 = vshrl.u32 %v555, 7
        %v557 = vsub.s32 %v554, %v556
        %v558 = vrot.slane %v551, %v557
        %v559 = vcombine.low %v531, %v538
        %v561 = vunpack.c.l.s4 1983009808
        %v562 = vunpack.c.0.s8 %v561
        %v563 = vlaneseq
        %v564 = vshrl.u32 %v563, 7
        %v565 = vsub.s32 %v562, %v564
        %v566 = vrot.slane %v559, %v565
        %v567 = vcombine.low %v541, %v542
        %v569 = vunpack.c.l.s4 1983009808
        %v570 = vunpack.c.0.s8 %v569
        %v571 = vlaneseq
        %v572 = vshrl.u32 %v571, 7
        %v573 = vsub.s32 %v570, %v572
        %v574 = vrot.slane %v567, %v573
        %v575 = vcombine.low %v550, %v558
        %v576 = vcombine.high %v550, %v558
        %v578 = vunpack.c.l.s4 1934713408
        %v579 = vunpack.c.0.s8 %v578
        %v580 = vlaneseq
        %v581 = vshrl.u32 %v580, 7
        %v582 = vsub.s32 %v579, %v581
        %v583 = vrot.slane %v575, %v582
        %v585 = vunpack.c.l.s4 1934713408
        %v586 = vunpack.c.0.s8 %v585
        %v587 = vlaneseq
        %v588 = vshrl.u32 %v587, 7
        %v589 = vsub.s32 %v586, %v588
        %v590 = vrot.slane %v576, %v589
        %v591 = vcombine.low %v566, %v574
        %v592 = vcombine.high %v566, %v574
        %v594 = vunpack.c.l.s4 1934713408
        %v595 = vunpack.c.0.s8 %v594
        %v596 = vlaneseq
        %v597 = vshrl.u32 %v596, 7
        %v598 = vsub.s32 %v595, %v597
        %v599 = vrot.slane %v591, %v598
        %v601 = vunpack.c.l.s4 1934713408
        %v602 = vunpack.c.0.s8 %v601
        %v603 = vlaneseq
        %v604 = vshrl.u32 %v603, 7
        %v605 = vsub.s32 %v602, %v604
        %v606 = vrot.slane %v592, %v605
        %v607 = vcombine.low %v583, %v599
        %v608 = vcombine.high %v583, %v599
        %v609 = vcombine.low %v590, %v606
        %v610 = vcombine.high %v590, %v606
        %vm611 = vcmask 64512
        %612 = vst.msk [vmem:[%s333] sm:$0xff] %vm611, %v607
        %613 = vst.msk [vmem:[%s333 + $0x8] sm:$0xff] %vm611, %v608
        %614 = vst.msk [vmem:[%s333 + $0x10] sm:$0xff] %vm611, %v609
        %615 = vst.msk [vmem:[%s333 + $0x18] sm:$0xff] %vm611, %v610
        %617 = vrot.lane.b32.xlu0 %v461, 120
        %v618 = vpop.permute.xlu0 %617
        %619 = vrot.lane.b32.xlu0 %v461, 112
        %v620 = vpop.permute.xlu0 %619
        %621 = vrot.lane.b32.xlu0 %v461, 104
        %v622 = vpop.permute.xlu0 %621
        %623 = vrot.lane.b32.xlu0 %v461, 96
        %v624 = vpop.permute.xlu0 %623
        %625 = vrot.lane.b32.xlu0 %v618, 96
        %v626 = vpop.permute.xlu0 %625
        %627 = vrot.lane.b32.xlu0 %v620, 96
        %v628 = vpop.permute.xlu0 %627
        %629 = vrot.lane.b32.xlu0 %v622, 96
        %v630 = vpop.permute.xlu0 %629
        %v635 = vcombine.low %v624, %v628
        %v636 = vcombine.high %v624, %v628
        %v638 = vunpack.c.l.s4 1983009808
        %v639 = vunpack.c.0.s8 %v638
        %v640 = vlaneseq
        %v641 = vshrl.u32 %v640, 7
        %v642 = vsub.s32 %v639, %v641
        %v643 = vrot.slane %v635, %v642
        %v645 = vunpack.c.l.s4 1983009808
        %v646 = vunpack.c.0.s8 %v645
        %v647 = vlaneseq
        %v648 = vshrl.u32 %v647, 7
        %v649 = vsub.s32 %v646, %v648
        %v650 = vrot.slane %v636, %v649
        %v651 = vcombine.low %v626, %v630
        %v652 = vcombine.high %v626, %v630
        %v654 = vunpack.c.l.s4 1983009808
        %v655 = vunpack.c.0.s8 %v654
        %v656 = vlaneseq
        %v657 = vshrl.u32 %v656, 7
        %v658 = vsub.s32 %v655, %v657
        %v659 = vrot.slane %v651, %v658
        %v661 = vunpack.c.l.s4 1983009808
        %v662 = vunpack.c.0.s8 %v661
        %v663 = vlaneseq
        %v664 = vshrl.u32 %v663, 7
        %v665 = vsub.s32 %v662, %v664
        %v666 = vrot.slane %v652, %v665
        %v667 = vcombine.low %v643, %v659
        %v668 = vcombine.high %v643, %v659
        %v670 = vunpack.c.l.s4 1934713408
        %v671 = vunpack.c.0.s8 %v670
        %v672 = vlaneseq
        %v673 = vshrl.u32 %v672, 7
        %v674 = vsub.s32 %v671, %v673
        %v675 = vrot.slane %v667, %v674
        %v677 = vunpack.c.l.s4 1934713408
        %v678 = vunpack.c.0.s8 %v677
        %v679 = vlaneseq
        %v680 = vshrl.u32 %v679, 7
        %v681 = vsub.s32 %v678, %v680
        %v682 = vrot.slane %v668, %v681
        %v683 = vcombine.low %v650, %v666
        %v684 = vcombine.high %v650, %v666
        %v686 = vunpack.c.l.s4 1934713408
        %v687 = vunpack.c.0.s8 %v686
        %v688 = vlaneseq
        %v689 = vshrl.u32 %v688, 7
        %v690 = vsub.s32 %v687, %v689
        %v691 = vrot.slane %v683, %v690
        %v693 = vunpack.c.l.s4 1934713408
        %v694 = vunpack.c.0.s8 %v693
        %v695 = vlaneseq
        %v696 = vshrl.u32 %v695, 7
        %v697 = vsub.s32 %v694, %v696
        %v698 = vrot.slane %v684, %v697
        %v699 = vcombine.high %v675, 0.0
        %v700 = vcombine.high %v682, 0.0
        %v701 = vcombine.high %v691, 0.0
        %v702 = vcombine.high %v698, 0.0
        %v703 = vcombine.low %v675, %v682
        %v705 = vunpack.c.l.s4 1983009808
        %v706 = vunpack.c.0.s8 %v705
        %v707 = vlaneseq
        %v708 = vshrl.u32 %v707, 7
        %v709 = vsub.s32 %v706, %v708
        %v710 = vrot.slane %v703, %v709
        %v711 = vcombine.low %v699, %v700
        %v713 = vunpack.c.l.s4 1983009808
        %v714 = vunpack.c.0.s8 %v713
        %v715 = vlaneseq
        %v716 = vshrl.u32 %v715, 7
        %v717 = vsub.s32 %v714, %v716
        %v718 = vrot.slane %v711, %v717
        %v719 = vcombine.low %v691, %v698
        %v721 = vunpack.c.l.s4 1983009808
        %v722 = vunpack.c.0.s8 %v721
        %v723 = vlaneseq
        %v724 = vshrl.u32 %v723, 7
        %v725 = vsub.s32 %v722, %v724
        %v726 = vrot.slane %v719, %v725
        %v727 = vcombine.low %v701, %v702
        %v729 = vunpack.c.l.s4 1983009808
        %v730 = vunpack.c.0.s8 %v729
        %v731 = vlaneseq
        %v732 = vshrl.u32 %v731, 7
        %v733 = vsub.s32 %v730, %v732
        %v734 = vrot.slane %v727, %v733
        %v735 = vcombine.low %v710, %v718
        %v736 = vcombine.high %v710, %v718
        %v738 = vunpack.c.l.s4 1934713408
        %v739 = vunpack.c.0.s8 %v738
        %v740 = vlaneseq
        %v741 = vshrl.u32 %v740, 7
        %v742 = vsub.s32 %v739, %v741
        %v743 = vrot.slane %v735, %v742
        %v745 = vunpack.c.l.s4 1934713408
        %v746 = vunpack.c.0.s8 %v745
        %v747 = vlaneseq
        %v748 = vshrl.u32 %v747, 7
        %v749 = vsub.s32 %v746, %v748
        %v750 = vrot.slane %v736, %v749
        %v751 = vcombine.low %v726, %v734
        %v752 = vcombine.high %v726, %v734
        %v754 = vunpack.c.l.s4 1934713408
        %v755 = vunpack.c.0.s8 %v754
        %v756 = vlaneseq
        %v757 = vshrl.u32 %v756, 7
        %v758 = vsub.s32 %v755, %v757
        %v759 = vrot.slane %v751, %v758
        %v761 = vunpack.c.l.s4 1934713408
        %v762 = vunpack.c.0.s8 %v761
        %v763 = vlaneseq
        %v764 = vshrl.u32 %v763, 7
        %v765 = vsub.s32 %v762, %v764
        %v766 = vrot.slane %v752, %v765
        %v767 = vcombine.low %v743, %v759
        %v768 = vcombine.high %v743, %v759
        %v769 = vcombine.low %v750, %v766
        %v770 = vcombine.high %v750, %v766
        %771 = vst.msk [vmem:[%s340] sm:$0xff] %vm611, %v767
        %772 = vst.msk [vmem:[%s340 + $0x8] sm:$0xff] %vm611, %v768
        %773 = vst.msk [vmem:[%s340 + $0x10] sm:$0xff] %vm611, %v769
        %774 = vst.msk [vmem:[%s340 + $0x18] sm:$0xff] %vm611, %v770
        %775 = vrot.lane.b32.xlu0 %v461, 64
        %v776 = vpop.permute.xlu0 %775
        %777 = vrot.lane.b32.xlu0 %v618, 64
        %v778 = vpop.permute.xlu0 %777
        %779 = vrot.lane.b32.xlu0 %v620, 64
        %v780 = vpop.permute.xlu0 %779
        %781 = vrot.lane.b32.xlu0 %v622, 64
        %v782 = vpop.permute.xlu0 %781
        %v787 = vcombine.low %v776, %v780
        %v788 = vcombine.high %v776, %v780
        %v790 = vunpack.c.l.s4 1983009808
        %v791 = vunpack.c.0.s8 %v790
        %v792 = vlaneseq
        %v793 = vshrl.u32 %v792, 7
        %v794 = vsub.s32 %v791, %v793
        %v795 = vrot.slane %v787, %v794
        %v797 = vunpack.c.l.s4 1983009808
        %v798 = vunpack.c.0.s8 %v797
        %v799 = vlaneseq
        %v800 = vshrl.u32 %v799, 7
        %v801 = vsub.s32 %v798, %v800
        %v802 = vrot.slane %v788, %v801
        %v803 = vcombine.low %v778, %v782
        %v804 = vcombine.high %v778, %v782
        %v806 = vunpack.c.l.s4 1983009808
        %v807 = vunpack.c.0.s8 %v806
        %v808 = vlaneseq
        %v809 = vshrl.u32 %v808, 7
        %v810 = vsub.s32 %v807, %v809
        %v811 = vrot.slane %v803, %v810
        %v813 = vunpack.c.l.s4 1983009808
        %v814 = vunpack.c.0.s8 %v813
        %v815 = vlaneseq
        %v816 = vshrl.u32 %v815, 7
        %v817 = vsub.s32 %v814, %v816
        %v818 = vrot.slane %v804, %v817
        %v819 = vcombine.low %v795, %v811
        %v820 = vcombine.high %v795, %v811
        %v822 = vunpack.c.l.s4 1934713408
        %v823 = vunpack.c.0.s8 %v822
        %v824 = vlaneseq
        %v825 = vshrl.u32 %v824, 7
        %v826 = vsub.s32 %v823, %v825
        %v827 = vrot.slane %v819, %v826
        %v829 = vunpack.c.l.s4 1934713408
        %v830 = vunpack.c.0.s8 %v829
        %v831 = vlaneseq
        %v832 = vshrl.u32 %v831, 7
        %v833 = vsub.s32 %v830, %v832
        %v834 = vrot.slane %v820, %v833
        %v835 = vcombine.low %v802, %v818
        %v836 = vcombine.high %v802, %v818
        %v838 = vunpack.c.l.s4 1934713408
        %v839 = vunpack.c.0.s8 %v838
        %v840 = vlaneseq
        %v841 = vshrl.u32 %v840, 7
        %v842 = vsub.s32 %v839, %v841
        %v843 = vrot.slane %v835, %v842
        %v845 = vunpack.c.l.s4 1934713408
        %v846 = vunpack.c.0.s8 %v845
        %v847 = vlaneseq
        %v848 = vshrl.u32 %v847, 7
        %v849 = vsub.s32 %v846, %v848
        %v850 = vrot.slane %v836, %v849
        %v851 = vcombine.high %v827, 0.0
        %v852 = vcombine.high %v834, 0.0
        %v853 = vcombine.high %v843, 0.0
        %v854 = vcombine.high %v850, 0.0
        %v855 = vcombine.low %v827, %v834
        %v857 = vunpack.c.l.s4 1983009808
        %v858 = vunpack.c.0.s8 %v857
        %v859 = vlaneseq
        %v860 = vshrl.u32 %v859, 7
        %v861 = vsub.s32 %v858, %v860
        %v862 = vrot.slane %v855, %v861
        %v863 = vcombine.low %v851, %v852
        %v865 = vunpack.c.l.s4 1983009808
        %v866 = vunpack.c.0.s8 %v865
        %v867 = vlaneseq
        %v868 = vshrl.u32 %v867, 7
        %v869 = vsub.s32 %v866, %v868
        %v870 = vrot.slane %v863, %v869
        %v871 = vcombine.low %v843, %v850
        %v873 = vunpack.c.l.s4 1983009808
        %v874 = vunpack.c.0.s8 %v873
        %v875 = vlaneseq
        %v876 = vshrl.u32 %v875, 7
        %v877 = vsub.s32 %v874, %v876
        %v878 = vrot.slane %v871, %v877
        %v879 = vcombine.low %v853, %v854
        %v881 = vunpack.c.l.s4 1983009808
        %v882 = vunpack.c.0.s8 %v881
        %v883 = vlaneseq
        %v884 = vshrl.u32 %v883, 7
        %v885 = vsub.s32 %v882, %v884
        %v886 = vrot.slane %v879, %v885
        %v887 = vcombine.low %v862, %v870
        %v888 = vcombine.high %v862, %v870
        %v890 = vunpack.c.l.s4 1934713408
        %v891 = vunpack.c.0.s8 %v890
        %v892 = vlaneseq
        %v893 = vshrl.u32 %v892, 7
        %v894 = vsub.s32 %v891, %v893
        %v895 = vrot.slane %v887, %v894
        %v897 = vunpack.c.l.s4 1934713408
        %v898 = vunpack.c.0.s8 %v897
        %v899 = vlaneseq
        %v900 = vshrl.u32 %v899, 7
        %v901 = vsub.s32 %v898, %v900
        %v902 = vrot.slane %v888, %v901
        %v903 = vcombine.low %v878, %v886
        %v904 = vcombine.high %v878, %v886
        %v906 = vunpack.c.l.s4 1934713408
        %v907 = vunpack.c.0.s8 %v906
        %v908 = vlaneseq
        %v909 = vshrl.u32 %v908, 7
        %v910 = vsub.s32 %v907, %v909
        %v911 = vrot.slane %v903, %v910
        %v913 = vunpack.c.l.s4 1934713408
        %v914 = vunpack.c.0.s8 %v913
        %v915 = vlaneseq
        %v916 = vshrl.u32 %v915, 7
        %v917 = vsub.s32 %v914, %v916
        %v918 = vrot.slane %v904, %v917
        %v919 = vcombine.low %v895, %v911
        %v920 = vcombine.high %v895, %v911
        %v921 = vcombine.low %v902, %v918
        %v922 = vcombine.high %v902, %v918
        %923 = vst.msk [vmem:[%s347] sm:$0xff] %vm611, %v919
        %924 = vst.msk [vmem:[%s347 + $0x8] sm:$0xff] %vm611, %v920
        %925 = vst.msk [vmem:[%s347 + $0x10] sm:$0xff] %vm611, %v921
        %926 = vst.msk [vmem:[%s347 + $0x18] sm:$0xff] %vm611, %v922
        %s927 = sand.u32 %s163, 1
        %s928 = scalar_lea.sflag [#allocation4], %s927
        %s929 = sand.u32 %s163, 1
        %s930 = smul.addr %s929, 32
        %s931 = scalar_lea.vmem [#allocation7], %s930
        %s932 = sand.u32 %s29, 1
        %s933 = scalar_lea.sflag [#allocation9], %s932
        %s934 = sand.u32 %s191, 1
        %s935 = smul.addr %s934, 32
        %s936 = scalar_lea.vmem [#allocation8], %s935
        %s937 = sand.u32 %s29, 1
        %s938 = scalar_lea.sflag [#allocation9], %s937
        %s939 = sand.u32 %s219, 1
        %s940 = smul.addr %s939, 32
        %s941 = scalar_lea.vmem [#allocation10], %s940
        // Predicated region
        $region49: #{tpu_custom_call.1} parent=39 // pred_check
          %p942 = pneg %p173
        $region50: #{tpu_custom_call.1} parent=39 // pred_check_branch
          %944 = sbr.rel (%p942) target = $region52
        $region51: #{tpu_custom_call.1} parent=39 // pred_region
          %s946 = ssub.s32 512, 512
          %947 = vsyncadd %s928, %s946
          %s948 = smul.addr %s33, 4
          %s949 = sadd.s32 %s34, %s948
          %s950 = smul.addr %s949, 128
          %s951 = scalar_lea.hbm %s5, %s950
          %s952 = sshll.u32 %s931, 4
          %s953 = int_to_ptr.vmem [resolvable:$true] %s952
          %958 = dma.vmem_to_hbm [thread:$0]  %s953, 512, %s951, %s928, 128, 128, 8
        $region52: #{tpu_custom_call.1} parent=39 // pred_fallthru
          _
        // Predicated region
        $region53: #{tpu_custom_call.1} parent=39 // pred_check
          %p959 = pneg %p201
        $region54: #{tpu_custom_call.1} parent=39 // pred_check_branch
          %961 = sbr.rel (%p959) target = $region56
        $region55: #{tpu_custom_call.1} parent=39 // pred_region
          %s963 = ssub.s32 512, 512
          %964 = vsyncadd %s933, %s963
          %s965 = smul.addr %s33, 4
          %s966 = sadd.s32 %s34, %s965
          %s967 = smul.addr %s966, 128
          %s968 = scalar_lea.hbm %s6, %s967
          %s969 = sshll.u32 %s936, 4
          %s970 = int_to_ptr.vmem [resolvable:$true] %s969
          %975 = dma.vmem_to_hbm [thread:$0]  %s970, 512, %s968, %s933, 128, 128, 8
        $region56: #{tpu_custom_call.1} parent=39 // pred_fallthru
          _
        // Predicated region
        $region57: #{tpu_custom_call.1} parent=39 // pred_check
          %p976 = pneg %p229
        $region58: #{tpu_custom_call.1} parent=39 // pred_check_branch
          %978 = sbr.rel (%p976) target = $region60
        $region59: #{tpu_custom_call.1} parent=39 // pred_region
          %s980 = ssub.s32 512, 512
          %981 = vsyncadd %s938, %s980
          %s982 = smul.addr %s33, 4
          %s983 = sadd.s32 %s34, %s982
          %s984 = smul.addr %s983, 128
          %s985 = scalar_lea.hbm %s7, %s984
          %s986 = sshll.u32 %s941, 4
          %s987 = int_to_ptr.vmem [resolvable:$true] %s986
          %992 = dma.vmem_to_hbm [thread:$0]  %s987, 512, %s985, %s938, 128, 128, 8
        $region60: #{tpu_custom_call.1} parent=39 // pred_fallthru
          _
      $region40: #{tpu_custom_call.1} parent=5 // pred_fallthru
        _
      %p993 = scmp.le.s32.totalorder 2, %s24
      // Predicated region
      $region61: #{tpu_custom_call.1} parent=5 // pred_check
        %p994 = pneg %p993
      $region62: #{tpu_custom_call.1} parent=5 // pred_check_branch
        %996 = sbr.rel (%p994) target = $region64
      $region63: #{tpu_custom_call.1} parent=5 // pred_region
        %s997 = ssub.s32 %s24, 2
        // Predicated region
        $region65: #{tpu_custom_call.1} parent=63 // pred_check
          %p998 = pneg %p179
        $region66: #{tpu_custom_call.1} parent=63 // pred_check_branch
          %1000 = sbr.rel (%p998) target = $region68
        $region67: #{tpu_custom_call.1} parent=63 // pred_region
          %s1001 = sand.u32 %s164, 1
          %s1002 = scalar_lea.sflag [#allocation4], %s1001
          %s1003 = sand.u32 %s164, 1
          %s1004 = smul.addr %s1003, 32
          %s1005 = scalar_lea.vmem [#allocation7], %s1004
          %1006 = dma.done %s1002, 512
        $region68: #{tpu_custom_call.1} parent=63 // pred_fallthru
          _
        // Predicated region
        $region69: #{tpu_custom_call.1} parent=63 // pred_check
          %p1007 = pneg %p207
        $region70: #{tpu_custom_call.1} parent=63 // pred_check_branch
          %1009 = sbr.rel (%p1007) target = $region72
        $region71: #{tpu_custom_call.1} parent=63 // pred_region
          %s1010 = sand.u32 %s30, 1
          %s1011 = scalar_lea.sflag [#allocation9], %s1010
          %s1012 = sand.u32 %s192, 1
          %s1013 = smul.addr %s1012, 32
          %s1014 = scalar_lea.vmem [#allocation8], %s1013
          %1015 = dma.done %s1011, 512
        $region72: #{tpu_custom_call.1} parent=63 // pred_fallthru
          _
        // Predicated region
        $region73: #{tpu_custom_call.1} parent=63 // pred_check
          %p1016 = pneg %p235
        $region74: #{tpu_custom_call.1} parent=63 // pred_check_branch
          %1018 = sbr.rel (%p1016) target = $region76
        $region75: #{tpu_custom_call.1} parent=63 // pred_region
          %s1019 = sand.u32 %s30, 1
          %s1020 = scalar_lea.sflag [#allocation9], %s1019
          %s1021 = sand.u32 %s220, 1
          %s1022 = smul.addr %s1021, 32
          %s1023 = scalar_lea.vmem [#allocation10], %s1022
          %1024 = dma.done %s1020, 512
        $region76: #{tpu_custom_call.1} parent=63 // pred_fallthru
          _
      $region64: #{tpu_custom_call.1} parent=5 // pred_fallthru
        _
    $region6: #{tpu_custom_call.1} parent=1 // loop_footer
      %s28 = sadd.s32 1, %s24
    $region7: #{tpu_custom_call.1} parent=1 // loop_footer_branch
      %23 = sbr.rel target = $region3
    $region8: #{tpu_custom_call.1} parent=1 // loop_exit
      _
    %1025 = vsyncpa [#allocation3], 1
    %s1026 = scalar_lea.sflag [#allocation3], 1
    %1027 = vsyncpa %s1026, 1
    %1028 = vsyncpa [#allocation6], 1
    %1029 = vsyncpa [#allocation4], 1
    %s1030 = scalar_lea.sflag [#allocation4], 1
    %1031 = vsyncpa %s1030, 1
    %1032 = vsyncpa [#allocation9], 1
    %s1033 = scalar_lea.sflag [#allocation9], 1
    %1034 = vsyncpa %s1033, 1

// kernel: tpu_custom_call.1
$region0: #{tpu_custom_call.1}
  #allocation0 [shape = 'u32[]', space=smem, size = 0x4, offset = 0x4, fixed_abs, tag = 'smem constant byte address 0x4 - core index']
  #allocation1 [shape = 'u32[144,128]{1,0:T(1,128)}', space=vmem, size = 0x12000, scoped, tag = 'internal scratch']
  %s0 = inlined_call_operand.hbm [shape: f32[2,8,32], index: 0, kind: input, shape index: {}]
  %s1 = inlined_call_operand.vmem [shape: f32[1,32], index: 1, kind: input, shape index: {}]
  %s2 = inlined_call_operand.vmem [shape: f32[1,32], index: 2, kind: input, shape index: {}]
  %s3 = inlined_call_operand.hbm [shape: f32[32,96], index: 3, kind: input, shape index: {}]
  %s4 = inlined_call_operand.vmem [shape: f32[1,96], index: 4, kind: input, shape index: {}]
  %s5 = inlined_call_operand.hbm [shape: f32[2,4,8,8], index: 5, kind: output, shape index: {0}]
  %s6 = inlined_call_operand.hbm [shape: f32[2,4,8,8], index: 6, kind: output, shape index: {1}]
  %s7 = inlined_call_operand.hbm [shape: f32[2,4,8,8], index: 7, kind: output, shape index: {2}]
  %8 = xla_tuple %s5, %s6, %s7
  %s9 = sld [smem:[#allocation0]]
  $region77: #{tpu_custom_call.1} parent=0
    _
  %s11 = ssub.s32 1, %s9
  %s12 = scalar_select 0, %s11, %s9
  $region1: #{tpu_custom_call.1} parent=0
    #allocation2 [shape = 'u8[8192]{0}', space=vmem, size = 0x2000, scoped, tag = 'input window, operand 0']
    #allocation3 [shape = 's32[2]{0}', space=sflag, size = 0x8, scoped, tag = 'scoped memory for tpu_custom_call.1']
    #allocation4 [shape = 's32[2]{0}', space=sflag, size = 0x8, scoped, tag = 'scoped memory for tpu_custom_call.1']
    #allocation5 [shape = 'u8[16384]{0}', space=vmem, size = 0x4000, scoped, tag = 'input window, operand 3, single buffered']
    #allocation6 [shape = 's32[1]{0}', space=sflag, size = 0x4, scoped, tag = 'scoped memory for tpu_custom_call.1']
    #allocation7 [shape = 'u8[32768]{0}', space=vmem, size = 0x8000, scoped, tag = 'output window, operand 0']
    #allocation8 [shape = 'u8[32768]{0}', space=vmem, size = 0x8000, scoped, tag = 'output window, operand 1']
    #allocation9 [shape = 's32[2]{0}', space=sflag, size = 0x8, scoped, tag = 'scoped memory for tpu_custom_call.1']
    #allocation10 [shape = 'u8[32768]{0}', space=vmem, size = 0x8000, scoped, tag = 'output window, operand 2']
    %13 = vsyncpa [#allocation3], 0
    %s14 = scalar_lea.sflag [#allocation3], 1
    %15 = vsyncpa %s14, 0
    %16 = vsyncpa [#allocation6], 0
    %17 = vsyncpa [#allocation4], 0
    %s18 = scalar_lea.sflag [#allocation4], 1
    %19 = vsyncpa %s18, 0
    %20 = vsyncpa [#allocation9], 0
    %s21 = scalar_lea.sflag [#allocation9], 1
    %22 = vsyncpa %s21, 0
    loop: start=0, step=1, limit=4
    $region2: #{tpu_custom_call.1} parent=1 // loop_pre_header
      _
    $region3: #{tpu_custom_call.1} parent=1 // loop_header
      %s24 = sphi 0, %s28
      %p25 = scmp.ge.s32.totalorder %s24, 4
      %s31 = sphi 0, %s43
      %s32 = sphi 0, %s39
      %s33 = sphi 0, %s31
      %s34 = sphi 0, %s32
      %s35 = sphi 0, %s33
      %s36 = sphi 0, %s34
      %s48 = sphi 0, %s50
      %s51 = sphi 0, %s48
      %s52 = sphi 0, %s51
      %s68 = sphi 0, %s52
      %s72 = sphi 0, %s72
      %s74 = sphi 0, %s72
      %s75 = sphi 0, %s74
      %s89 = sphi 0, %s75
      %s93 = sphi 0, %s93
      %s95 = sphi 0, %s93
      %s96 = sphi 0, %s95
      %s110 = sphi 0, %s96
      %s114 = sphi 0, %s114
      %s116 = sphi 0, %s114
      %s117 = sphi 0, %s116
      %s131 = sphi 0, %s117
      %s135 = sphi 0, %s135
      %s137 = sphi 0, %s135
      %s138 = sphi 0, %s137
      %s152 = sphi 0, %s138
      %s160 = sphi 0, %s162
      %s163 = sphi 0, %s160
      %s164 = sphi 0, %s163
      %s180 = sphi 0, %s164
      %s188 = sphi 0, %s190
      %s191 = sphi 0, %s188
      %s192 = sphi 0, %s191
      %s208 = sphi 0, %s192
      %s216 = sphi 0, %s218
      %s219 = sphi 0, %s216
      %s220 = sphi 0, %s219
      %s236 = sphi 0, %s220
    $region4: #{tpu_custom_call.1} parent=1 // loop_header_branch
      %27 = sbr.rel (%p25) target = $region8
    $region5: #{tpu_custom_call.1} parent=1 // loop_body
      %s29 = ssub.s32 %s24, 1
      %s30 = ssub.s32 %s24, 2
      %s37 = sadd.s32 1, %s32
      %p38 = scmp.ge.s32.totalorder %s37, 1
      %s39 = scalar_select %p38, 0, %s37
      %s40 = sadd.s32 1, %s31
      %s41 = scalar_select %p38, %s40, %s31
      %p42 = scmp.ge.s32.totalorder %s41, 2
      %s43 = scalar_select %p42, 0, %s41
      %s44 = ssub.s32 %s31, %s43
      %s45 = ssub.s32 %s32, %s39
      %s46 = sor.u32 %s44, %s45
      %p47 = scmp.eq.s32.totalorder %s46, 0
      %s49 = sadd.s32 %s48, 1
      %s50 = scalar_select %p47, %s48, %s49
      %p53 = pneg %p47
      %p54 = scmp.eq.s32.totalorder %s24, 1
      %p55 = por %p53, %p54
      %p56 = scmp.ne.s32.totalorder %s48, %s51
      %p57 = scmp.eq.s32.totalorder %s24, 0
      %p58 = por %p56, %p57
      %p59 = scmp.ne.s32.totalorder %s48, %s51
      %p60 = scmp.eq.s32.totalorder %s29, 1
      %p61 = por %p59, %p60
      %p62 = scmp.ne.s32.totalorder %s51, %s52
      %p63 = scmp.eq.s32.totalorder %s29, 0
      %p64 = por %p62, %p63
      %p65 = scmp.ne.s32.totalorder %s51, %s52
      %p66 = scmp.eq.s32.totalorder %s30, 1
      %p67 = por %p65, %p66
      %p69 = scmp.ne.s32.totalorder %s52, %s68
      %p70 = scmp.eq.s32.totalorder %s30, 0
      %p71 = por %p69, %p70
      %s73 = sadd.s32 %s72, 1
      %p76 = scmp.eq.s32.totalorder %s24, 1
      %p77 = scmp.ne.s32.totalorder %s72, %s74
      %p78 = scmp.eq.s32.totalorder %s24, 0
      %p79 = por %p77, %p78
      %p80 = scmp.ne.s32.totalorder %s72, %s74
      %p81 = scmp.eq.s32.totalorder %s29, 1
      %p82 = por %p80, %p81
      %p83 = scmp.ne.s32.totalorder %s74, %s75
      %p84 = scmp.eq.s32.totalorder %s29, 0
      %p85 = por %p83, %p84
      %p86 = scmp.ne.s32.totalorder %s74, %s75
      %p87 = scmp.eq.s32.totalorder %s30, 1
      %p88 = por %p86, %p87
      %p90 = scmp.ne.s32.totalorder %s75, %s89
      %p91 = scmp.eq.s32.totalorder %s30, 0
      %p92 = por %p90, %p91
      %s94 = sadd.s32 %s93, 1
      %p97 = scmp.eq.s32.totalorder %s24, 1
      %p98 = scmp.ne.s32.totalorder %s93, %s95
      %p99 = scmp.eq.s32.totalorder %s24, 0
      %p100 = por %p98, %p99
      %p101 = scmp.ne.s32.totalorder %s93, %s95
      %p102 = scmp.eq.s32.totalorder %s29, 1
      %p103 = por %p101, %p102
      %p104 = scmp.ne.s32.totalorder %s95, %s96
      %p105 = scmp.eq.s32.totalorder %s29, 0
      %p106 = por %p104, %p105
      %p107 = scmp.ne.s32.totalorder %s95, %s96
      %p108 = scmp.eq.s32.totalorder %s30, 1
      %p109 = por %p107, %p108
      %p111 = scmp.ne.s32.totalorder %s96, %s110
      %p112 = scmp.eq.s32.totalorder %s30, 0
      %p113 = por %p111, %p112
      %s115 = sadd.s32 %s114, 1
      %p118 = scmp.eq.s32.totalorder %s24, 1
      %p119 = scmp.ne.s32.totalorder %s114, %s116
      %p120 = scmp.eq.s32.totalorder %s24, 0
      %p121 = por %p119, %p120
      %p122 = scmp.ne.s32.totalorder %s114, %s116
      %p123 = scmp.eq.s32.totalorder %s29, 1
      %p124 = por %p122, %p123
      %p125 = scmp.ne.s32.totalorder %s116, %s117
      %p126 = scmp.eq.s32.totalorder %s29, 0
      %p127 = por %p125, %p126
      %p128 = scmp.ne.s32.totalorder %s116, %s117
      %p129 = scmp.eq.s32.totalorder %s30, 1
      %p130 = por %p128, %p129
      %p132 = scmp.ne.s32.totalorder %s117, %s131
      %p133 = scmp.eq.s32.totalorder %s30, 0
      %p134 = por %p132, %p133
      %s136 = sadd.s32 %s135, 1
      %p139 = scmp.eq.s32.totalorder %s24, 1
      %p140 = scmp.ne.s32.totalorder %s135, %s137
      %p141 = scmp.eq.s32.totalorder %s24, 0
      %p142 = por %p140, %p141
      %p143 = scmp.ne.s32.totalorder %s135, %s137
      %p144 = scmp.eq.s32.totalorder %s29, 1
      %p145 = por %p143, %p144
      %p146 = scmp.ne.s32.totalorder %s137, %s138
      %p147 = scmp.eq.s32.totalorder %s29, 0
      %p148 = por %p146, %p147
      %p149 = scmp.ne.s32.totalorder %s137, %s138
      %p150 = scmp.eq.s32.totalorder %s30, 1
      %p151 = por %p149, %p150
      %p153 = scmp.ne.s32.totalorder %s138, %s152
      %p154 = scmp.eq.s32.totalorder %s30, 0
      %p155 = por %p153, %p154
      %s156 = ssub.s32 %s31, %s43
      %s157 = ssub.s32 %s32, %s39
      %s158 = sor.u32 %s156, %s157
      %p159 = scmp.eq.s32.totalorder %s158, 0
      %s161 = sadd.s32 %s160, 1
      %s162 = scalar_select %p159, %s160, %s161
      %p165 = pneg %p159
      %p166 = scmp.eq.s32.totalorder %s24, 1
      %p167 = por %p165, %p166
      %p168 = scmp.ne.s32.totalorder %s160, %s163
      %p169 = scmp.eq.s32.totalorder %s24, 0
      %p170 = por %p168, %p169
      %p171 = scmp.ne.s32.totalorder %s160, %s163
      %p172 = scmp.eq.s32.totalorder %s29, 1
      %p173 = por %p171, %p172
      %p174 = scmp.ne.s32.totalorder %s163, %s164
      %p175 = scmp.eq.s32.totalorder %s29, 0
      %p176 = por %p174, %p175
      %p177 = scmp.ne.s32.totalorder %s163, %s164
      %p178 = scmp.eq.s32.totalorder %s30, 1
      %p179 = por %p177, %p178
      %p181 = scmp.ne.s32.totalorder %s164, %s180
      %p182 = scmp.eq.s32.totalorder %s30, 0
      %p183 = por %p181, %p182
      %s184 = ssub.s32 %s31, %s43
      %s185 = ssub.s32 %s32, %s39
      %s186 = sor.u32 %s184, %s185
      %p187 = scmp.eq.s32.totalorder %s186, 0
      %s189 = sadd.s32 %s188, 1
      %s190 = scalar_select %p187, %s188, %s189
      %p193 = pneg %p187
      %p194 = scmp.eq.s32.totalorder %s24, 1
      %p195 = por %p193, %p194
      %p196 = scmp.ne.s32.totalorder %s188, %s191
      %p197 = scmp.eq.s32.totalorder %s24, 0
      %p198 = por %p196, %p197
      %p199 = scmp.ne.s32.totalorder %s188, %s191
      %p200 = scmp.eq.s32.totalorder %s29, 1
      %p201 = por %p199, %p200
      %p202 = scmp.ne.s32.totalorder %s191, %s192
      %p203 = scmp.eq.s32.totalorder %s29, 0
      %p204 = por %p202, %p203
      %p205 = scmp.ne.s32.totalorder %s191, %s192
      %p206 = scmp.eq.s32.totalorder %s30, 1
      %p207 = por %p205, %p206
      %p209 = scmp.ne.s32.totalorder %s192, %s208
      %p210 = scmp.eq.s32.totalorder %s30, 0
      %p211 = por %p209, %p210
      %s212 = ssub.s32 %s31, %s43
      %s213 = ssub.s32 %s32, %s39
      %s214 = sor.u32 %s212, %s213
      %p215 = scmp.eq.s32.totalorder %s214, 0
      %s217 = sadd.s32 %s216, 1
      %s218 = scalar_select %p215, %s216, %s217
      %p221 = pneg %p215
      %p222 = scmp.eq.s32.totalorder %s24, 1
      %p223 = por %p221, %p222
      %p224 = scmp.ne.s32.totalorder %s216, %s219
      %p225 = scmp.eq.s32.totalorder %s24, 0
      %p226 = por %p224, %p225
      %p227 = scmp.ne.s32.totalorder %s216, %s219
      %p228 = scmp.eq.s32.totalorder %s29, 1
      %p229 = por %p227, %p228
      %p230 = scmp.ne.s32.totalorder %s219, %s220
      %p231 = scmp.eq.s32.totalorder %s29, 0
      %p232 = por %p230, %p231
      %p233 = scmp.ne.s32.totalorder %s219, %s220
      %p234 = scmp.eq.s32.totalorder %s30, 1
      %p235 = por %p233, %p234
      %p237 = scmp.ne.s32.totalorder %s220, %s236
      %p238 = scmp.eq.s32.totalorder %s30, 0
      %p239 = por %p237, %p238
      %p240 = scmp.le.s32.totalorder 1, %s24
      %p241 = scmp.lt.s32.totalorder %s24, 3
      %p242 = pnand %p240, %p241
      %p243 = pneg %p242
      // Predicated region
      $region9: #{tpu_custom_call.1} parent=5 // pred_check
        _
      $region10: #{tpu_custom_call.1} parent=5 // pred_check_branch
        %245 = sbr.rel (%p242) target = $region12
      $region11: #{tpu_custom_call.1} parent=5 // pred_region
        %s246 = ssub.s32 %s24, 1
        // Predicated region
        $region13: #{tpu_custom_call.1} parent=11 // pred_check
          %p247 = pneg %p85
        $region14: #{tpu_custom_call.1} parent=11 // pred_check_branch
          %249 = sbr.rel (%p247) target = $region16
        $region15: #{tpu_custom_call.1} parent=11 // pred_region
          _
        $region16: #{tpu_custom_call.1} parent=11 // pred_fallthru
          _
        // Predicated region
        $region17: #{tpu_custom_call.1} parent=11 // pred_check
          %p250 = pneg %p106
        $region18: #{tpu_custom_call.1} parent=11 // pred_check_branch
          %252 = sbr.rel (%p250) target = $region20
        $region19: #{tpu_custom_call.1} parent=11 // pred_region
          _
        $region20: #{tpu_custom_call.1} parent=11 // pred_fallthru
          _
        // Predicated region
        $region21: #{tpu_custom_call.1} parent=11 // pred_check
          %p253 = pneg %p127
        $region22: #{tpu_custom_call.1} parent=11 // pred_check_branch
          %255 = sbr.rel (%p253) target = $region24
        $region23: #{tpu_custom_call.1} parent=11 // pred_region
          %s257 = ssub.s32 512, 512
          %258 = vsyncadd [#allocation6], %s257
          %s259 = sshll.u32 [#allocation5], 4
          %s260 = int_to_ptr.vmem [resolvable:$true] %s259
          %265 = dma.hbm_to_vmem [thread:$0]  %s3, 512, %s260, [#allocation6], 128, 128, 8
        $region24: #{tpu_custom_call.1} parent=11 // pred_fallthru
          _
        // Predicated region
        $region25: #{tpu_custom_call.1} parent=11 // pred_check
          %p266 = pneg %p148
        $region26: #{tpu_custom_call.1} parent=11 // pred_check_branch
          %268 = sbr.rel (%p266) target = $region28
        $region27: #{tpu_custom_call.1} parent=11 // pred_region
          _
        $region28: #{tpu_custom_call.1} parent=11 // pred_fallthru
          _
      $region12: #{tpu_custom_call.1} parent=5 // pred_fallthru
        _
      %p269 = scmp.lt.s32.totalorder %s24, 2
      // Predicated region
      $region29: #{tpu_custom_call.1} parent=5 // pred_check
        %p270 = pneg %p269
      $region30: #{tpu_custom_call.1} parent=5 // pred_check_branch
        %272 = sbr.rel (%p270) target = $region32
      $region31: #{tpu_custom_call.1} parent=5 // pred_region
        // Predicated region
        $region33: #{tpu_custom_call.1} parent=31 // pred_check
          %p273 = pneg %p58
        $region34: #{tpu_custom_call.1} parent=31 // pred_check_branch
          %275 = sbr.rel (%p273) target = $region36
        $region35: #{tpu_custom_call.1} parent=31 // pred_region
          %s276 = sand.u32 %s48, 1
          %s277 = scalar_lea.sflag [#allocation3], %s276
          %s278 = sand.u32 %s48, 1
          %s279 = smul.addr %s278, 8
          %s280 = scalar_lea.vmem [#allocation2], %s279
          %s282 = ssub.s32 128, 128
          %283 = vsyncadd %s277, %s282
          %s284 = sadd.s32 %s32, %s31
          %s285 = smul.addr %s284, 128
          %s286 = scalar_lea.hbm %s0, %s285
          %s288 = sshll.u32 %s280, 4
          %s289 = int_to_ptr.vmem [resolvable:$true] %s288
          %291 = dma.hbm_to_vmem [thread:$0]  %s286, 128, %s289, %s277
        $region36: #{tpu_custom_call.1} parent=31 // pred_fallthru
          _
      $region32: #{tpu_custom_call.1} parent=5 // pred_fallthru
        _
      %p292 = scmp.le.s32.totalorder 1, %s24
      %p293 = scmp.lt.s32.totalorder %s24, 3
      %p294 = pnand %p292, %p293
      %p295 = pneg %p294
      // Predicated region
      $region37: #{tpu_custom_call.1} parent=5 // pred_check
        _
      $region38: #{tpu_custom_call.1} parent=5 // pred_check_branch
        %297 = sbr.rel (%p294) target = $region40
      $region39: #{tpu_custom_call.1} parent=5 // pred_region
        %s298 = ssub.s32 %s24, 1
        %s299 = sand.u32 %s51, 1
        %s300 = scalar_lea.sflag [#allocation3], %s299
        %s301 = sand.u32 %s51, 1
        %s302 = smul.addr %s301, 8
        %s303 = scalar_lea.vmem [#allocation2], %s302
        // Predicated region
        $region41: #{tpu_custom_call.1} parent=39 // pred_check
          %p304 = pneg %p64
        $region42: #{tpu_custom_call.1} parent=39 // pred_check_branch
          %306 = sbr.rel (%p304) target = $region44
        $region43: #{tpu_custom_call.1} parent=39 // pred_region
          %307 = dma.done %s300, 128
        $region44: #{tpu_custom_call.1} parent=39 // pred_fallthru
          _
        // Predicated region
        $region45: #{tpu_custom_call.1} parent=39 // pred_check
          %p308 = pneg %p127
        $region46: #{tpu_custom_call.1} parent=39 // pred_check_branch
          %310 = sbr.rel (%p308) target = $region48
        $region47: #{tpu_custom_call.1} parent=39 // pred_region
          %311 = dma.done [#allocation6], 512
        $region48: #{tpu_custom_call.1} parent=39 // pred_fallthru
          _
        %s312 = sand.u32 %s51, 1
        %s313 = scalar_lea.sflag [#allocation3], %s312
        %s314 = sand.u32 %s51, 1
        %s315 = smul.addr %s314, 8
        %s316 = scalar_lea.vmem [#allocation2], %s315
        %p317 = pneg %p64
        %p318 = pneg %p61
        %p319 = pneg %p85
        %p320 = pneg %p82
        %p321 = pneg %p106
        %p322 = pneg %p103
        %p323 = pneg %p127
        %p324 = pneg %p124
        %p325 = pneg %p148
        %p326 = pneg %p145
        %p327 = pneg %p176
        %p328 = pneg %p173
        %s329 = sand.u32 %s163, 1
        %s330 = scalar_lea.sflag [#allocation4], %s329
        %s331 = sand.u32 %s163, 1
        %s332 = smul.addr %s331, 32
        %s333 = scalar_lea.vmem [#allocation7], %s332
        %p334 = pneg %p204
        %p335 = pneg %p201
        %s336 = sand.u32 %s29, 1
        %s337 = scalar_lea.sflag [#allocation9], %s336
        %s338 = sand.u32 %s191, 1
        %s339 = smul.addr %s338, 32
        %s340 = scalar_lea.vmem [#allocation8], %s339
        %p341 = pneg %p232
        %p342 = pneg %p229
        %s343 = sand.u32 %s29, 1
        %s344 = scalar_lea.sflag [#allocation9], %s343
        %s345 = sand.u32 %s219, 1
        %s346 = smul.addr %s345, 32
        %s347 = scalar_lea.vmem [#allocation10], %s346
        %v348 = vld [vmem:[%s303] sm:$0xff]
        %v349 = vld [vmem:[%s1] sm:$0x1]
        %v350 = vld [vmem:[%s2] sm:$0x1]
        %vm351 = vcmask 261120
        %v352 = vsel %vm351, %v348, 0.0
        %353 = vadd.xlane.f32.xlu0 %v352
        %v354 = vpop.xlane.xlu0 %353
        %v355 = vrcp.pop 32.0
        %v356 = vmul.f32 %v354, %v355
        %v357 = vsub.f32 %v348, %v356
        %v358 = vmul.f32 %v357, %v357
        %v359 = vsel %vm351, %v358, 0.0
        %360 = vadd.xlane.f32.xlu0 %v359
        %v361 = vpop.xlane.xlu0 %360
        %v362 = vmul.f32 %v361, %v355
        %v363 = vadd.f32 %v362, 1e-05
        %v364 = vrsqrt.pop %v363
        %v365 = vmul.f32 %v357, %v364
        %v367 = vlaneseq
        %v368 = vshrl.u32 %v367, 7
        %v369 = vsub.s32 0, %v368
        %v370 = vrot.slane %v349, %v369
        %v372 = vmul.f32 %v365, %v370
        %v374 = vlaneseq
        %v375 = vshrl.u32 %v374, 7
        %v376 = vsub.s32 0, %v375
        %v377 = vrot.slane %v350, %v376
        %v379 = vadd.f32 %v372, %v377
        %v380 = vld [vmem:[#allocation5] sm:$0xff]
        %v381 = vld [vmem:[#allocation5 + $0x8] sm:$0xff]
        %v382 = vld [vmem:[#allocation5 + $0x10] sm:$0xff]
        %v383 = vld [vmem:[#allocation5 + $0x18] sm:$0xff]
        %v384 = vld [vmem:[%s4] sm:$0x1]
        %v386 = vlaneseq
        %v387 = vshrl.u32 %v386, 7
        %v388 = vsub.s32 0, %v387
        %v389 = vrot.slane %v384, %v388
        %v392 = vsel %vm351, %v379, 0
        %394 = vmatprep.subr.mxu0 0.0
        %395 = vmatpush1.msra.mxu0 0.0
        %396 = vmatprep.subr.mxu0 0.0
        %397 = vmatpush1.msra.mxu0 0.0
        %398 = vmatprep.subr.mxu0 0.0
        %399 = vmatpush1.msra.mxu0 0.0
        %400 = vmatprep.subr.mxu0 0.0
        %401 = vmatpush1.msra.mxu0 0.0
        %402 = vmatprep.subr.mxu0 0.0
        %403 = vmatpush1.msra.mxu0 0.0
        %404 = vmatprep.subr.mxu0 0.0
        %405 = vmatpush1.msra.mxu0 0.0
        %406 = vmatprep.subr.mxu0 0.0
        %407 = vmatpush1.msra.mxu0 0.0
        %408 = vmatprep.subr.mxu0 0.0
        %409 = vmatpush1.msra.mxu0 0.0
        %410 = vmatprep.subr.mxu0 0.0
        %411 = vmatpush1.msra.mxu0 0.0
        %412 = vmatprep.subr.mxu0 0.0
        %413 = vmatpush1.msra.mxu0 0.0
        %414 = vmatprep.subr.mxu0 0.0
        %415 = vmatpush1.msra.mxu0 0.0
        %416 = vmatprep.subr.mxu0 0.0
        %417 = vmatpush1.msra.mxu0 0.0
        %418 = vmatprep.subr.mxu0 0.0
        %419 = vmatpush1.msra.mxu0 %v383
        %420 = vmatprep.subr.mxu0 0.0
        %421 = vmatpush1.msra.mxu0 %v382
        %422 = vmatprep.subr.mxu0 0.0
        %423 = vmatpush1.msra.mxu0 %v381
        %424 = vmatprep.subr.mxu0 0.0
        %425 = vmatpush1.msra.mxu0 %v380
        %426 = vmatprep.subr.mxu0 0.0
        %427 = vmatpush2.msra.mxu0 0.0
        %428 = vmatprep.subr.mxu0 0.0
        %429 = vmatpush2.msra.mxu0 0.0
        %430 = vmatprep.subr.mxu0 0.0
        %431 = vmatpush2.msra.mxu0 0.0
        %432 = vmatprep.subr.mxu0 0.0
        %433 = vmatpush2.msra.mxu0 0.0
        %434 = vmatprep.subr.mxu0 0.0
        %435 = vmatpush2.msra.mxu0 0.0
        %436 = vmatprep.subr.mxu0 0.0
        %437 = vmatpush2.msra.mxu0 0.0
        %438 = vmatprep.subr.mxu0 0.0
        %439 = vmatpush2.msra.mxu0 0.0
        %440 = vmatprep.subr.mxu0 0.0
        %441 = vmatpush2.msra.mxu0 0.0
        %442 = vmatprep.subr.mxu0 0.0
        %443 = vmatpush2.msra.mxu0 0.0
        %444 = vmatprep.subr.mxu0 0.0
        %445 = vmatpush2.msra.mxu0 0.0
        %446 = vmatprep.subr.mxu0 0.0
        %447 = vmatpush2.msra.mxu0 0.0
        %448 = vmatprep.subr.mxu0 0.0
        %449 = vmatpush2.msra.mxu0 0.0
        %450 = vmatprep.subr.mxu0 0.0
        %451 = vmatpush2.msra.mxu0 0.0
        %452 = vmatprep.subr.mxu0 0.0
        %453 = vmatpush2.msra.mxu0 0.0
        %454 = vmatprep.subr.mxu0 0.0
        %455 = vmatpush2.msra.mxu0 0.0
        %456 = vmatprep.subr.mxu0 0.0
        %457 = vmatpush2.msra.mxu0 0.0
        %458 = vmatprep.mubr.f32.mxu0 0.0
        %459 = vmatmul.mubr.f32.gmra.mxu0 %v392
        %v460 = vpop.f32.mrf.mxu0
        %v461 = vadd.f32 %v389, %v460
        %v462 = vpop.f32.mrf.mxu0
        %463 = vdwg.mxu0
        %v464 = vmul.f32 %v461, 0.35355338
        %466 = vrot.lane.b32.xlu0 %v464, 120
        %v467 = vpop.permute.xlu0 %466
        %469 = vrot.lane.b32.xlu0 %v464, 112
        %v470 = vpop.permute.xlu0 %469
        %472 = vrot.lane.b32.xlu0 %v464, 104
        %v473 = vpop.permute.xlu0 %472
        %v475 = vcombine.low %v464, %v470
        %v476 = vcombine.high %v464, %v470
        %v478 = vunpack.c.l.s4 1983009808
        %v479 = vunpack.c.0.s8 %v478
        %v480 = vlaneseq
        %v481 = vshrl.u32 %v480, 7
        %v482 = vsub.s32 %v479, %v481
        %v483 = vrot.slane %v475, %v482
        %v485 = vunpack.c.l.s4 1983009808
        %v486 = vunpack.c.0.s8 %v485
        %v487 = vlaneseq
        %v488 = vshrl.u32 %v487, 7
        %v489 = vsub.s32 %v486, %v488
        %v490 = vrot.slane %v476, %v489
        %v491 = vcombine.low %v467, %v473
        %v492 = vcombine.high %v467, %v473
        %v494 = vunpack.c.l.s4 1983009808
        %v495 = vunpack.c.0.s8 %v494
        %v496 = vlaneseq
        %v497 = vshrl.u32 %v496, 7
        %v498 = vsub.s32 %v495, %v497
        %v499 = vrot.slane %v491, %v498
        %v501 = vunpack.c.l.s4 1983009808
        %v502 = vunpack.c.0.s8 %v501
        %v503 = vlaneseq
        %v504 = vshrl.u32 %v503, 7
        %v505 = vsub.s32 %v502, %v504
        %v506 = vrot.slane %v492, %v505
        %v507 = vcombine.low %v483, %v499
        %v508 = vcombine.high %v483, %v499
        %v510 = vunpack.c.l.s4 1934713408
        %v511 = vunpack.c.0.s8 %v510
        %v512 = vlaneseq
        %v513 = vshrl.u32 %v512, 7
        %v514 = vsub.s32 %v511, %v513
        %v515 = vrot.slane %v507, %v514
        %v517 = vunpack.c.l.s4 1934713408
        %v518 = vunpack.c.0.s8 %v517
        %v519 = vlaneseq
        %v520 = vshrl.u32 %v519, 7
        %v521 = vsub.s32 %v518, %v520
        %v522 = vrot.slane %v508, %v521
        %v523 = vcombine.low %v490, %v506
        %v524 = vcombine.high %v490, %v506
        %v526 = vunpack.c.l.s4 1934713408
        %v527 = vunpack.c.0.s8 %v526
        %v528 = vlaneseq
        %v529 = vshrl.u32 %v528, 7
        %v530 = vsub.s32 %v527, %v529
        %v531 = vrot.slane %v523, %v530
        %v533 = vunpack.c.l.s4 1934713408
        %v534 = vunpack.c.0.s8 %v533
        %v535 = vlaneseq
        %v536 = vshrl.u32 %v535, 7
        %v537 = vsub.s32 %v534, %v536
        %v538 = vrot.slane %v524, %v537
        %v539 = vcombine.high %v515, 0.0
        %v540 = vcombine.high %v522, 0.0
        %v541 = vcombine.high %v531, 0.0
        %v542 = vcombine.high %v538, 0.0
        %v543 = vcombine.low %v515, %v522
        %v545 = vunpack.c.l.s4 1983009808
        %v546 = vunpack.c.0.s8 %v545
        %v547 = vlaneseq
        %v548 = vshrl.u32 %v547, 7
        %v549 = vsub.s32 %v546, %v548
        %v550 = vrot.slane %v543, %v549
        %v551 = vcombine.low %v539, %v540
        %v553 = vunpack.c.l.s4 1983009808
        %v554 = vunpack.c.0.s8 %v553
        %v555 = vlaneseq
        %v556 = vshrl.u32 %v555, 7
        %v557 = vsub.s32 %v554, %v556
        %v558 = vrot.slane %v551, %v557
        %v559 = vcombine.low %v531, %v538
        %v561 = vunpack.c.l.s4 1983009808
        %v562 = vunpack.c.0.s8 %v561
        %v563 = vlaneseq
        %v564 = vshrl.u32 %v563, 7
        %v565 = vsub.s32 %v562, %v564
        %v566 = vrot.slane %v559, %v565
        %v567 = vcombine.low %v541, %v542
        %v569 = vunpack.c.l.s4 1983009808
        %v570 = vunpack.c.0.s8 %v569
        %v571 = vlaneseq
        %v572 = vshrl.u32 %v571, 7
        %v573 = vsub.s32 %v570, %v572
        %v574 = vrot.slane %v567, %v573
        %v575 = vcombine.low %v550, %v558
        %v576 = vcombine.high %v550, %v558
        %v578 = vunpack.c.l.s4 1934713408
        %v579 = vunpack.c.0.s8 %v578
        %v580 = vlaneseq
        %v581 = vshrl.u32 %v580, 7
        %v582 = vsub.s32 %v579, %v581
        %v583 = vrot.slane %v575, %v582
        %v585 = vunpack.c.l.s4 1934713408
        %v586 = vunpack.c.0.s8 %v585
        %v587 = vlaneseq
        %v588 = vshrl.u32 %v587, 7
        %v589 = vsub.s32 %v586, %v588
        %v590 = vrot.slane %v576, %v589
        %v591 = vcombine.low %v566, %v574
        %v592 = vcombine.high %v566, %v574
        %v594 = vunpack.c.l.s4 1934713408
        %v595 = vunpack.c.0.s8 %v594
        %v596 = vlaneseq
        %v597 = vshrl.u32 %v596, 7
        %v598 = vsub.s32 %v595, %v597
        %v599 = vrot.slane %v591, %v598
        %v601 = vunpack.c.l.s4 1934713408
        %v602 = vunpack.c.0.s8 %v601
        %v603 = vlaneseq
        %v604 = vshrl.u32 %v603, 7
        %v605 = vsub.s32 %v602, %v604
        %v606 = vrot.slane %v592, %v605
        %v607 = vcombine.low %v583, %v599
        %v608 = vcombine.high %v583, %v599
        %v609 = vcombine.low %v590, %v606
        %v610 = vcombine.high %v590, %v606
        %vm611 = vcmask 64512
        %612 = vst.msk [vmem:[%s333] sm:$0xff] %vm611, %v607
        %613 = vst.msk [vmem:[%s333 + $0x8] sm:$0xff] %vm611, %v608
        %614 = vst.msk [vmem:[%s333 + $0x10] sm:$0xff] %vm611, %v609
        %615 = vst.msk [vmem:[%s333 + $0x18] sm:$0xff] %vm611, %v610
        %617 = vrot.lane.b32.xlu0 %v461, 120
        %v618 = vpop.permute.xlu0 %617
        %619 = vrot.lane.b32.xlu0 %v461, 112
        %v620 = vpop.permute.xlu0 %619
        %621 = vrot.lane.b32.xlu0 %v461, 104
        %v622 = vpop.permute.xlu0 %621
        %623 = vrot.lane.b32.xlu0 %v461, 96
        %v624 = vpop.permute.xlu0 %623
        %625 = vrot.lane.b32.xlu0 %v618, 96
        %v626 = vpop.permute.xlu0 %625
        %627 = vrot.lane.b32.xlu0 %v620, 96
        %v628 = vpop.permute.xlu0 %627
        %629 = vrot.lane.b32.xlu0 %v622, 96
        %v630 = vpop.permute.xlu0 %629
        %v635 = vcombine.low %v624, %v628
        %v636 = vcombine.high %v624, %v628
        %v638 = vunpack.c.l.s4 1983009808
        %v639 = vunpack.c.0.s8 %v638
        %v640 = vlaneseq
        %v641 = vshrl.u32 %v640, 7
        %v642 = vsub.s32 %v639, %v641
        %v643 = vrot.slane %v635, %v642
        %v645 = vunpack.c.l.s4 1983009808
        %v646 = vunpack.c.0.s8 %v645
        %v647 = vlaneseq
        %v648 = vshrl.u32 %v647, 7
        %v649 = vsub.s32 %v646, %v648
        %v650 = vrot.slane %v636, %v649
        %v651 = vcombine.low %v626, %v630
        %v652 = vcombine.high %v626, %v630
        %v654 = vunpack.c.l.s4 1983009808
        %v655 = vunpack.c.0.s8 %v654
        %v656 = vlaneseq
        %v657 = vshrl.u32 %v656, 7
        %v658 = vsub.s32 %v655, %v657
        %v659 = vrot.slane %v651, %v658
        %v661 = vunpack.c.l.s4 1983009808
        %v662 = vunpack.c.0.s8 %v661
        %v663 = vlaneseq
        %v664 = vshrl.u32 %v663, 7
        %v665 = vsub.s32 %v662, %v664
        %v666 = vrot.slane %v652, %v665
        %v667 = vcombine.low %v643, %v659
        %v668 = vcombine.high %v643, %v659
        %v670 = vunpack.c.l.s4 1934713408
        %v671 = vunpack.c.0.s8 %v670
        %v672 = vlaneseq
        %v673 = vshrl.u32 %v672, 7
        %v674 = vsub.s32 %v671, %v673
        %v675 = vrot.slane %v667, %v674
        %v677 = vunpack.c.l.s4 1934713408
        %v678 = vunpack.c.0.s8 %v677
        %v679 = vlaneseq
        %v680 = vshrl.u32 %v679, 7
        %v681 = vsub.s32 %v678, %v680
        %v682 = vrot.slane %v668, %v681
        %v683 = vcombine.low %v650, %v666
        %v684 = vcombine.high %v650, %v666
        %v686 = vunpack.c.l.s4 1934713408
        %v687 = vunpack.c.0.s8 %v686
        %v688 = vlaneseq
        %v689 = vshrl.u32 %v688, 7
        %v690 = vsub.s32 %v687, %v689
        %v691 = vrot.slane %v683, %v690
        %v693 = vunpack.c.l.s4 1934713408
        %v694 = vunpack.c.0.s8 %v693
        %v695 = vlaneseq
        %v696 = vshrl.u32 %v695, 7
        %v697 = vsub.s32 %v694, %v696
        %v698 = vrot.slane %v684, %v697
        %v699 = vcombine.high %v675, 0.0
        %v700 = vcombine.high %v682, 0.0
        %v701 = vcombine.high %v691, 0.0
        %v702 = vcombine.high %v698, 0.0
        %v703 = vcombine.low %v675, %v682
        %v705 = vunpack.c.l.s4 1983009808
        %v706 = vunpack.c.0.s8 %v705
        %v707 = vlaneseq
        %v708 = vshrl.u32 %v707, 7
        %v709 = vsub.s32 %v706, %v708
        %v710 = vrot.slane %v703, %v709
        %v711 = vcombine.low %v699, %v700
        %v713 = vunpack.c.l.s4 1983009808
        %v714 = vunpack.c.0.s8 %v713
        %v715 = vlaneseq
        %v716 = vshrl.u32 %v715, 7
        %v717 = vsub.s32 %v714, %v716
        %v718 = vrot.slane %v711, %v717
        %v719 = vcombine.low %v691, %v698
        %v721 = vunpack.c.l.s4 1983009808
        %v722 = vunpack.c.0.s8 %v721
        %v723 = vlaneseq
        %v724 = vshrl.u32 %v723, 7
        %v725 = vsub.s32 %v722, %v724
        %v726 = vrot.slane %v719, %v725
        %v727 = vcombine.low %v701, %v702
        %v729 = vunpack.c.l.s4 1983009808
        %v730 = vunpack.c.0.s8 %v729
        %v731 = vlaneseq
        %v732 = vshrl.u32 %v731, 7
        %v733 = vsub.s32 %v730, %v732
        %v734 = vrot.slane %v727, %v733
        %v735 = vcombine.low %v710, %v718
        %v736 = vcombine.high %v710, %v718
        %v738 = vunpack.c.l.s4 1934713408
        %v739 = vunpack.c.0.s8 %v738
        %v740 = vlaneseq
        %v741 = vshrl.u32 %v740, 7
        %v742 = vsub.s32 %v739, %v741
        %v743 = vrot.slane %v735, %v742
        %v745 = vunpack.c.l.s4 1934713408
        %v746 = vunpack.c.0.s8 %v745
        %v747 = vlaneseq
        %v748 = vshrl.u32 %v747, 7
        %v749 = vsub.s32 %v746, %v748
        %v750 = vrot.slane %v736, %v749
        %v751 = vcombine.low %v726, %v734
        %v752 = vcombine.high %v726, %v734
        %v754 = vunpack.c.l.s4 1934713408
        %v755 = vunpack.c.0.s8 %v754
        %v756 = vlaneseq
        %v757 = vshrl.u32 %v756, 7
        %v758 = vsub.s32 %v755, %v757
        %v759 = vrot.slane %v751, %v758
        %v761 = vunpack.c.l.s4 1934713408
        %v762 = vunpack.c.0.s8 %v761
        %v763 = vlaneseq
        %v764 = vshrl.u32 %v763, 7
        %v765 = vsub.s32 %v762, %v764
        %v766 = vrot.slane %v752, %v765
        %v767 = vcombine.low %v743, %v759
        %v768 = vcombine.high %v743, %v759
        %v769 = vcombine.low %v750, %v766
        %v770 = vcombine.high %v750, %v766
        %771 = vst.msk [vmem:[%s340] sm:$0xff] %vm611, %v767
        %772 = vst.msk [vmem:[%s340 + $0x8] sm:$0xff] %vm611, %v768
        %773 = vst.msk [vmem:[%s340 + $0x10] sm:$0xff] %vm611, %v769
        %774 = vst.msk [vmem:[%s340 + $0x18] sm:$0xff] %vm611, %v770
        %775 = vrot.lane.b32.xlu0 %v461, 64
        %v776 = vpop.permute.xlu0 %775
        %777 = vrot.lane.b32.xlu0 %v618, 64
        %v778 = vpop.permute.xlu0 %777
        %779 = vrot.lane.b32.xlu0 %v620, 64
        %v780 = vpop.permute.xlu0 %779
        %781 = vrot.lane.b32.xlu0 %v622, 64
        %v782 = vpop.permute.xlu0 %781
        %v787 = vcombine.low %v776, %v780
        %v788 = vcombine.high %v776, %v780
        %v790 = vunpack.c.l.s4 1983009808
        %v791 = vunpack.c.0.s8 %v790
        %v792 = vlaneseq
        %v793 = vshrl.u32 %v792, 7
        %v794 = vsub.s32 %v791, %v793
        %v795 = vrot.slane %v787, %v794
        %v797 = vunpack.c.l.s4 1983009808
        %v798 = vunpack.c.0.s8 %v797
        %v799 = vlaneseq
        %v800 = vshrl.u32 %v799, 7
        %v801 = vsub.s32 %v798, %v800
        %v802 = vrot.slane %v788, %v801
        %v803 = vcombine.low %v778, %v782
        %v804 = vcombine.high %v778, %v782
        %v806 = vunpack.c.l.s4 1983009808
        %v807 = vunpack.c.0.s8 %v806
        %v808 = vlaneseq
        %v809 = vshrl.u32 %v808, 7
        %v810 = vsub.s32 %v807, %v809
        %v811 = vrot.slane %v803, %v810
        %v813 = vunpack.c.l.s4 1983009808
        %v814 = vunpack.c.0.s8 %v813
        %v815 = vlaneseq
        %v816 = vshrl.u32 %v815, 7
        %v817 = vsub.s32 %v814, %v816
        %v818 = vrot.slane %v804, %v817
        %v819 = vcombine.low %v795, %v811
        %v820 = vcombine.high %v795, %v811
        %v822 = vunpack.c.l.s4 1934713408
        %v823 = vunpack.c.0.s8 %v822
        %v824 = vlaneseq
        %v825 = vshrl.u32 %v824, 7
        %v826 = vsub.s32 %v823, %v825
        %v827 = vrot.slane %v819, %v826
        %v829 = vunpack.c.l.s4 1934713408
        %v830 = vunpack.c.0.s8 %v829
        %v831 = vlaneseq
        %v832 = vshrl.u32 %v831, 7
        %v833 = vsub.s32 %v830, %v832
        %v834 = vrot.slane %v820, %v833
        %v835 = vcombine.low %v802, %v818
        %v836 = vcombine.high %v802, %v818
        %v838 = vunpack.c.l.s4 1934713408
        %v839 = vunpack.c.0.s8 %v838
        %v840 = vlaneseq
        %v841 = vshrl.u32 %v840, 7
        %v842 = vsub.s32 %v839, %v841
        %v843 = vrot.slane %v835, %v842
        %v845 = vunpack.c.l.s4 1934713408
        %v846 = vunpack.c.0.s8 %v845
        %v847 = vlaneseq
        %v848 = vshrl.u32 %v847, 7
        %v849 = vsub.s32 %v846, %v848
        %v850 = vrot.slane %v836, %v849
        %v851 = vcombine.high %v827, 0.0
        %v852 = vcombine.high %v834, 0.0
        %v853 = vcombine.high %v843, 0.0
        %v854 = vcombine.high %v850, 0.0
        %v855 = vcombine.low %v827, %v834
        %v857 = vunpack.c.l.s4 1983009808
        %v858 = vunpack.c.0.s8 %v857
        %v859 = vlaneseq
        %v860 = vshrl.u32 %v859, 7
        %v861 = vsub.s32 %v858, %v860
        %v862 = vrot.slane %v855, %v861
        %v863 = vcombine.low %v851, %v852
        %v865 = vunpack.c.l.s4 1983009808
        %v866 = vunpack.c.0.s8 %v865
        %v867 = vlaneseq
        %v868 = vshrl.u32 %v867, 7
        %v869 = vsub.s32 %v866, %v868
        %v870 = vrot.slane %v863, %v869
        %v871 = vcombine.low %v843, %v850
        %v873 = vunpack.c.l.s4 1983009808
        %v874 = vunpack.c.0.s8 %v873
        %v875 = vlaneseq
        %v876 = vshrl.u32 %v875, 7
        %v877 = vsub.s32 %v874, %v876
        %v878 = vrot.slane %v871, %v877
        %v879 = vcombine.low %v853, %v854
        %v881 = vunpack.c.l.s4 1983009808
        %v882 = vunpack.c.0.s8 %v881
        %v883 = vlaneseq
        %v884 = vshrl.u32 %v883, 7
        %v885 = vsub.s32 %v882, %v884
        %v886 = vrot.slane %v879, %v885
        %v887 = vcombine.low %v862, %v870
        %v888 = vcombine.high %v862, %v870
        %v890 = vunpack.c.l.s4 1934713408
        %v891 = vunpack.c.0.s8 %v890
        %v892 = vlaneseq
        %v893 = vshrl.u32 %v892, 7
        %v894 = vsub.s32 %v891, %v893
        %v895 = vrot.slane %v887, %v894
        %v897 = vunpack.c.l.s4 1934713408
        %v898 = vunpack.c.0.s8 %v897
        %v899 = vlaneseq
        %v900 = vshrl.u32 %v899, 7
        %v901 = vsub.s32 %v898, %v900
        %v902 = vrot.slane %v888, %v901
        %v903 = vcombine.low %v878, %v886
        %v904 = vcombine.high %v878, %v886
        %v906 = vunpack.c.l.s4 1934713408
        %v907 = vunpack.c.0.s8 %v906
        %v908 = vlaneseq
        %v909 = vshrl.u32 %v908, 7
        %v910 = vsub.s32 %v907, %v909
        %v911 = vrot.slane %v903, %v910
        %v913 = vunpack.c.l.s4 1934713408
        %v914 = vunpack.c.0.s8 %v913
        %v915 = vlaneseq
        %v916 = vshrl.u32 %v915, 7
        %v917 = vsub.s32 %v914, %v916
        %v918 = vrot.slane %v904, %v917
        %v919 = vcombine.low %v895, %v911
        %v920 = vcombine.high %v895, %v911
        %v921 = vcombine.low %v902, %v918
        %v922 = vcombine.high %v902, %v918
        %923 = vst.msk [vmem:[%s347] sm:$0xff] %vm611, %v919
        %924 = vst.msk [vmem:[%s347 + $0x8] sm:$0xff] %vm611, %v920
        %925 = vst.msk [vmem:[%s347 + $0x10] sm:$0xff] %vm611, %v921
        %926 = vst.msk [vmem:[%s347 + $0x18] sm:$0xff] %vm611, %v922
        %s927 = sand.u32 %s163, 1
        %s928 = scalar_lea.sflag [#allocation4], %s927
        %s929 = sand.u32 %s163, 1
        %s930 = smul.addr %s929, 32
        %s931 = scalar_lea.vmem [#allocation7], %s930
        %s932 = sand.u32 %s29, 1
        %s933 = scalar_lea.sflag [#allocation9], %s932
        %s934 = sand.u32 %s191, 1
        %s935 = smul.addr %s934, 32
        %s936 = scalar_lea.vmem [#allocation8], %s935
        %s937 = sand.u32 %s29, 1
        %s938 = scalar_lea.sflag [#allocation9], %s937
        %s939 = sand.u32 %s219, 1
        %s940 = smul.addr %s939, 32
        %s941 = scalar_lea.vmem [#allocation10], %s940
        // Predicated region
        $region49: #{tpu_custom_call.1} parent=39 // pred_check
          %p942 = pneg %p173
        $region50: #{tpu_custom_call.1} parent=39 // pred_check_branch
          %944 = sbr.rel (%p942) target = $region52
        $region51: #{tpu_custom_call.1} parent=39 // pred_region
          %s946 = ssub.s32 512, 512
          %947 = vsyncadd %s928, %s946
          %s948 = smul.addr %s33, 4
          %s949 = sadd.s32 %s34, %s948
          %s950 = smul.addr %s949, 128
          %s951 = scalar_lea.hbm %s5, %s950
          %s952 = sshll.u32 %s931, 4
          %s953 = int_to_ptr.vmem [resolvable:$true] %s952
          %958 = dma.vmem_to_hbm [thread:$0]  %s953, 512, %s951, %s928, 128, 128, 8
        $region52: #{tpu_custom_call.1} parent=39 // pred_fallthru
          _
        // Predicated region
        $region53: #{tpu_custom_call.1} parent=39 // pred_check
          %p959 = pneg %p201
        $region54: #{tpu_custom_call.1} parent=39 // pred_check_branch
          %961 = sbr.rel (%p959) target = $region56
        $region55: #{tpu_custom_call.1} parent=39 // pred_region
          %s963 = ssub.s32 512, 512
          %964 = vsyncadd %s933, %s963
          %s965 = smul.addr %s33, 4
          %s966 = sadd.s32 %s34, %s965
          %s967 = smul.addr %s966, 128
          %s968 = scalar_lea.hbm %s6, %s967
          %s969 = sshll.u32 %s936, 4
          %s970 = int_to_ptr.vmem [resolvable:$true] %s969
          %975 = dma.vmem_to_hbm [thread:$0]  %s970, 512, %s968, %s933, 128, 128, 8
        $region56: #{tpu_custom_call.1} parent=39 // pred_fallthru
          _
        // Predicated region
        $region57: #{tpu_custom_call.1} parent=39 // pred_check
          %p976 = pneg %p229
        $region58: #{tpu_custom_call.1} parent=39 // pred_check_branch
          %978 = sbr.rel (%p976) target = $region60
        $region59: #{tpu_custom_call.1} parent=39 // pred_region
          %s980 = ssub.s32 512, 512
          %981 = vsyncadd %s938, %s980
          %s982 = smul.addr %s33, 4
          %s983 = sadd.s32 %s34, %s982
          %s984 = smul.addr %s983, 128
          %s985 = scalar_lea.hbm %s7, %s984
          %s986 = sshll.u32 %s941, 4
          %s987 = int_to_ptr.vmem [resolvable:$true] %s986
          %992 = dma.vmem_to_hbm [thread:$0]  %s987, 512, %s985, %s938, 128, 128, 8
        $region60: #{tpu_custom_call.1} parent=39 // pred_fallthru
          _
      $region40: #{tpu_custom_call.1} parent=5 // pred_fallthru
        _
      %p993 = scmp.le.s32.totalorder 2, %s24
      // Predicated region
      $region61: #{tpu_custom_call.1} parent=5 // pred_check
        %p994 = pneg %p993
      $region62: #{tpu_custom_call.1} parent=5 // pred_check_branch
        %996 = sbr.rel (%p994) target = $region64
      $region63: #{tpu_custom_call.1} parent=5 // pred_region
        %s997 = ssub.s32 %s24, 2
        // Predicated region
        $region65: #{tpu_custom_call.1} parent=63 // pred_check
          %p998 = pneg %p179
        $region66: #{tpu_custom_call.1} parent=63 // pred_check_branch
          %1000 = sbr.rel (%p998) target = $region68
        $region67: #{tpu_custom_call.1} parent=63 // pred_region
          %s1001 = sand.u32 %s164, 1
          %s1002 = scalar_lea.sflag [#allocation4], %s1001
          %s1003 = sand.u32 %s164, 1
          %s1004 = smul.addr %s1003, 32
          %s1005 = scalar_lea.vmem [#allocation7], %s1004
          %1006 = dma.done %s1002, 512
        $region68: #{tpu_custom_call.1} parent=63 // pred_fallthru
          _
        // Predicated region
        $region69: #{tpu_custom_call.1} parent=63 // pred_check
          %p1007 = pneg %p207
        $region70: #{tpu_custom_call.1} parent=63 // pred_check_branch
          %1009 = sbr.rel (%p1007) target = $region72
        $region71: #{tpu_custom_call.1} parent=63 // pred_region
          %s1010 = sand.u32 %s30, 1
          %s1011 = scalar_lea.sflag [#allocation9], %s1010
          %s1012 = sand.u32 %s192, 1
          %s1013 = smul.addr %s1012, 32
          %s1014 = scalar_lea.vmem [#allocation8], %s1013
          %1015 = dma.done %s1011, 512
        $region72: #{tpu_custom_call.1} parent=63 // pred_fallthru
          _
        // Predicated region
        $region73: #{tpu_custom_call.1} parent=63 // pred_check
          %p1016 = pneg %p235
        $region74: #{tpu_custom_call.1} parent=63 // pred_check_branch
          %1018 = sbr.rel (%p1016) target = $region76
        $region75: #{tpu_custom_call.1} parent=63 // pred_region
          %s1019 = sand.u32 %s30, 1
          %s1020 = scalar_lea.sflag [#allocation9], %s1019
          %s1021 = sand.u32 %s220, 1
          %s1022 = smul.addr %s1021, 32
          %s1023 = scalar_lea.vmem [#allocation10], %s1022
          %1024 = dma.done %s1020, 512
        $region76: #{tpu_custom_call.1} parent=63 // pred_fallthru
          _
      $region64: #{tpu_custom_call.1} parent=5 // pred_fallthru
        _
    $region6: #{tpu_custom_call.1} parent=1 // loop_footer
      %s28 = sadd.s32 1, %s24
    $region7: #{tpu_custom_call.1} parent=1 // loop_footer_branch
      %23 = sbr.rel target = $region3
    $region8: #{tpu_custom_call.1} parent=1 // loop_exit
      _
    %1025 = vsyncpa [#allocation3], 1
    %s1026 = scalar_lea.sflag [#allocation3], 1
    %1027 = vsyncpa %s1026, 1
    %1028 = vsyncpa [#allocation6], 1
    %1029 = vsyncpa [#allocation4], 1
    %s1030 = scalar_lea.sflag [#allocation4], 1
    %1031 = vsyncpa %s1030, 1
    %1032 = vsyncpa [#allocation9], 1
    %s1033 = scalar_lea.sflag [#allocation9], 1
    %1034 = vsyncpa %s1033, 1

</llo_original>
